<compile_context>
chip_gen: v7x
topology: tpu7x:2x2x1
jax: 0.10.0
libtpu: 0.0.40
codegen_flags: <defaults>
</compile_context>

<pallas_src>
import math
from types import SimpleNamespace

import jax
import jax.numpy as jnp
from jax import lax
from jax.experimental import pallas as pl
from jax.experimental.pallas import tpu as pltpu

HIDDEN = 512                 # fixed by the module (EqualLinear(512, 512))
LR_MUL = 0.01
NEG_SLOPE = 0.2
FLR_SCALE = math.sqrt(2.0)   # fused_leaky_relu output scale
PIXELNORM_EPS = 1e-8


def _round_up(n, m):
    return pl.cdiv(n, m) * m


# ---------------------------------------------------------------------------
# Kernel
# ---------------------------------------------------------------------------
def mapper_kernel(x_ref, wh_ref, bh_ref, w4_ref, b4_ref, o_ref):
    # x tile: (TM, 512) f32
    x = x_ref[...].astype(jnp.float32)

    # PixelNorm
    mean_sq = jnp.mean(x * x, axis=1, keepdims=True)
    h = x * lax.rsqrt(mean_sq + PIXELNORM_EPS)

    bh = bh_ref[...].astype(jnp.float32)          # (3, 512), lr_mul pre-folded

    # 3x EqualLinear(512 -> 512, fused_lrelu); scale pre-folded into bf16 weights
    for i in range(3):
        acc = jnp.dot(h.astype(jnp.bfloat16), wh_ref[i],
                      preferred_element_type=jnp.float32)
        acc = acc + bh[i]
        h = jnp.where(acc >= 0.0, acc, NEG_SLOPE * acc) * FLR_SCALE

    # Final EqualLinear(512 -> out_pad, fused_lrelu)
    acc = jnp.dot(h.astype(jnp.bfloat16), w4_ref[...],
                  preferred_element_type=jnp.float32)
    acc = acc + b4_ref[...].astype(jnp.float32)
    out = jnp.where(acc >= 0.0, acc, NEG_SLOPE * acc) * FLR_SCALE

    o_ref[...] = out.astype(o_ref.dtype)


# ---------------------------------------------------------------------------
# One-time parameter preparation (NOT in the per-call hot path)
# ---------------------------------------------------------------------------
def prepare_params(params):
    """Transpose (out,in)->(in,out), fold the EqualLinear runtime scale into W,
    fold lr_mul into b, cast W to bf16, pad final out_dim to a multiple of 128."""
    out_dim = params["w4"].shape[0]
    out_pad = int(_round_up(out_dim, 128))

    def prep_w(w):                                        # w: (out, in) f32
        in_d = w.shape[1]
        scale = (1.0 / math.sqrt(in_d)) * LR_MUL
        return (jnp.transpose(w) * scale).astype(jnp.bfloat16)   # (in, out) bf16

    wh = jnp.stack([prep_w(params["w1"]),
                    prep_w(params["w2"]),
                    prep_w(params["w3"])])                # (3, 512, 512) bf16
    bh = (jnp.stack([params["b1"], params["b2"], params["b3"]]) * LR_MUL
          ).astype(jnp.float32)                           # (3, 512) f32

    w4 = prep_w(params["w4"])                             # (512, out_dim) bf16
    b4 = (params["b4"] * LR_MUL).reshape(1, -1).astype(jnp.float32)
    if out_pad != out_dim:
        w4 = jnp.pad(w4, ((0, 0), (0, out_pad - out_dim)))
        b4 = jnp.pad(b4, ((0, 0), (0, out_pad - out_dim)))

    return {"wh": wh, "bh": bh, "w4": w4, "b4": b4,
            "out_dim": out_dim, "out_pad": out_pad}


# ---------------------------------------------------------------------------
# Forward wrapper
# ---------------------------------------------------------------------------
def mapper_forward(x, prep):
    """x: (B, 512) float32. prep: output of prepare_params()."""
    B = x.shape[0]
    out_dim, out_pad = prep["out_dim"], prep["out_pad"]

    # Batch tile: multiple of 8 (f32 sublane); cap at 256 to match v6e/v7x MXU rows.
    tm = int(min(256, _round_up(B, 8)))
    B_pad = int(_round_up(B, tm))
    x_p = x if B_pad == B else jnp.pad(x, ((0, B_pad - B), (0, 0)))

    out = pl.pallas_call(
        mapper_kernel,
        out_shape=jax.ShapeDtypeStruct((B_pad, out_pad), jnp.float32),
        grid=(B_pad // tm,),
        in_specs=[
            pl.BlockSpec((tm, HIDDEN), lambda i: (i, 0)),            # x: pipelined
            pl.BlockSpec((3, HIDDEN, HIDDEN), lambda i: (0, 0, 0)),  # weights: resident
            pl.BlockSpec((3, HIDDEN), lambda i: (0, 0)),             # hidden biases
            pl.BlockSpec((HIDDEN, out_pad), lambda i: (0, 0)),       # final weight
            pl.BlockSpec((1, out_pad), lambda i: (0, 0)),            # final bias
        ],
        out_specs=pl.BlockSpec((tm, out_pad), lambda i: (i, 0)),
        compiler_params=pltpu.CompilerParams(
            dimension_semantics=("parallel",)),
    )(x_p, prep["wh"], prep["bh"], prep["w4"], prep["b4"])

    return out[:B, :out_dim]


# ---------------------------------------------------------------------------
# Deterministic init matching EqualLinear.__init__:
#   weight ~ randn(out, in) / lr_mul ; bias = zeros (bias_init=0)
# ---------------------------------------------------------------------------
def init_params(key, n_dim, n_ctx):
    style_out = n_dim * n_ctx
    dims = [(HIDDEN, HIDDEN), (HIDDEN, HIDDEN), (HIDDEN, HIDDEN), (style_out, HIDDEN)]
    params = {}
    for i, (out_d, in_d) in enumerate(dims, start=1):
        key, sub = jax.random.split(key)
        params[f"w{i}"] = jax.random.normal(sub, (out_d, in_d), jnp.float32) / LR_MUL
        params[f"b{i}"] = jnp.zeros((out_d,), jnp.float32)
    return params


# Pure-JAX reference mirroring the kernel's bf16 weight / f32 accumulate scheme.
def _reference(x, prep):
    x = x.astype(jnp.float32)
    h = x * lax.rsqrt(jnp.mean(x * x, axis=1, keepdims=True) + PIXELNORM_EPS)
    for i in range(3):
        acc = jnp.dot(h.astype(jnp.bfloat16), prep["wh"][i],
                      preferred_element_type=jnp.float32) + prep["bh"][i]
        h = jnp.where(acc >= 0.0, acc, NEG_SLOPE * acc) * FLR_SCALE
    acc = jnp.dot(h.astype(jnp.bfloat16), prep["w4"],
                  preferred_element_type=jnp.float32) + prep["b4"]
    out = jnp.where(acc >= 0.0, acc, NEG_SLOPE * acc) * FLR_SCALE
    return out[:, :prep["out_dim"]]


if __name__ == "__main__":
    # Small, module-consistent shapes: input must be 512-dim (first EqualLinear is 512->512).
    opts = SimpleNamespace(n_ctx=2)
    n_dim = 128                      # style_dim
    B = 8

    key = jax.random.PRNGKey(0)
    kx, kp = jax.random.split(key)
    x = jax.random.normal(kx, (B, HIDDEN), jnp.float32)
    params = init_params(kp, n_dim, opts.n_ctx)
    prep = prepare_params(params)    # one-time: transpose + fold + bf16 cast + pad

    out = mapper_forward(x, prep)
    jax.block_until_ready(out)

    assert out.shape == (B, n_dim * opts.n_ctx), out.shape
    assert bool(jnp.all(jnp.isfinite(out)))
    ref = _reference(x, prep)
    assert bool(jnp.allclose(out, ref, rtol=2e-2, atol=2e-2))
    print("KERNEL_OK")
</pallas_src>

<mosaic_0001>
module attributes {stable_mosaic.version = 11 : i64} {
  func.func @mapper_kernel(%arg0: i32, %arg1: memref<8x512xf32, #tpu.memory_space<vmem>>, %arg2: memref<3x512x512xbf16, #tpu.memory_space<vmem>>, %arg3: memref<3x512xf32, #tpu.memory_space<vmem>>, %arg4: memref<512x256xbf16, #tpu.memory_space<vmem>>, %arg5: memref<1x256xf32, #tpu.memory_space<vmem>>, %arg6: memref<8x256xf32, #tpu.memory_space<vmem>>) attributes {dimension_semantics = [#tpu.dimension_semantics<parallel>], iteration_bounds = array<i64: 1>, scalar_prefetch = 0 : i64, scratch_operands = 0 : i64, tpu.core_type = #tpu.core_type<tc>, window_params = [{transform_indices = @transform_0, window_bounds = array<i64: 8, 512>}, {pipeline_mode = #tpu.pipeline_mode<synchronous>, transform_indices = @transform_1, window_bounds = array<i64: 3, 512, 512>}, {pipeline_mode = #tpu.pipeline_mode<synchronous>, transform_indices = @transform_2, window_bounds = array<i64: 3, 512>}, {pipeline_mode = #tpu.pipeline_mode<synchronous>, transform_indices = @transform_3, window_bounds = array<i64: 512, 256>}, {pipeline_mode = #tpu.pipeline_mode<synchronous>, transform_indices = @transform_4, window_bounds = array<i64: 1, 256>}, {transform_indices = @transform_5, window_bounds = array<i64: 8, 256>}]} {
    %c0 = arith.constant 0 : index
    %c0_0 = arith.constant 0 : index
    %0 = vector.load %arg1[%c0, %c0_0] : memref<8x512xf32, #tpu.memory_space<vmem>>, vector<8x512xf32>
    %1 = arith.mulf %0, %0 : vector<8x512xf32>
    %cst = arith.constant dense<0.000000e+00> : vector<8xf32>
    %2 = vector.multi_reduction <add>, %1, %cst [1] : vector<8x512xf32> to vector<8xf32>
    %3 = vector.shape_cast %2 : vector<8xf32> to vector<8x1xf32>
    %cst_1 = arith.constant 5.120000e+02 : f32
    %4 = vector.broadcast %cst_1 : f32 to vector<8x1xf32>
    %5 = arith.divf %3, %4 : vector<8x1xf32>
    %cst_2 = arith.constant 9.99999993E-9 : f32
    %6 = vector.broadcast %cst_2 : f32 to vector<8x1xf32>
    %7 = arith.addf %5, %6 : vector<8x1xf32>
    %8 = math.rsqrt %7 : vector<8x1xf32>
    %9 = vector.broadcast %8 : vector<8x1xf32> to vector<8x512xf32>
    %10 = arith.mulf %0, %9 : vector<8x512xf32>
    %c0_3 = arith.constant 0 : index
    %c0_4 = arith.constant 0 : index
    %11 = vector.load %arg3[%c0_3, %c0_4] : memref<3x512xf32, #tpu.memory_space<vmem>>, vector<3x512xf32>
    %12 = arith.truncf %10 : vector<8x512xf32> to vector<8x512xbf16>
    %c0_5 = arith.constant 0 : index
    %c0_6 = arith.constant 0 : index
    %c0_7 = arith.constant 0 : index
    %13 = vector.load %arg2[%c0_5, %c0_6, %c0_7] : memref<3x512x512xbf16, #tpu.memory_space<vmem>>, vector<1x512x512xbf16>
    %14 = vector.shape_cast %13 : vector<1x512x512xbf16> to vector<512x512xbf16>
    %cst_8 = arith.constant dense<0.000000e+00> : vector<8x512xf32>
    %15 = tpu.matmul %12, %14, %cst_8 {dimension_numbers = #tpu.dot_dimension_numbers<[1], [0], [0], [1], [0, 0, 1, 1], [], []>} : vector<8x512xbf16>, vector<512x512xbf16>, vector<8x512xf32> -> vector<8x512xf32>
    %16 = vector.extract_strided_slice %11 {offsets = [0, 0], sizes = [1, 512], strides = [1, 1]} : vector<3x512xf32> to vector<1x512xf32>
    %17 = vector.shape_cast %16 : vector<1x512xf32> to vector<512xf32>
    %18 = vector.shape_cast %17 : vector<512xf32> to vector<1x512xf32>
    %19 = vector.broadcast %18 : vector<1x512xf32> to vector<8x512xf32>
    %20 = arith.addf %15, %19 : vector<8x512xf32>
    %cst_9 = arith.constant 0.000000e+00 : f32
    %21 = vector.broadcast %cst_9 : f32 to vector<8x512xf32>
    %22 = arith.cmpf oge, %20, %21 : vector<8x512xf32>
    %cst_10 = arith.constant 2.000000e-01 : f32
    %23 = vector.broadcast %cst_10 : f32 to vector<8x512xf32>
    %24 = arith.mulf %23, %20 : vector<8x512xf32>
    %25 = arith.select %22, %20, %24 : vector<8x512xi1>, vector<8x512xf32>
    %cst_11 = arith.constant 1.41421354 : f32
    %26 = vector.broadcast %cst_11 : f32 to vector<8x512xf32>
    %27 = arith.mulf %25, %26 : vector<8x512xf32>
    %28 = arith.truncf %27 : vector<8x512xf32> to vector<8x512xbf16>
    %c1 = arith.constant 1 : index
    %c0_12 = arith.constant 0 : index
    %c0_13 = arith.constant 0 : index
    %29 = vector.load %arg2[%c1, %c0_12, %c0_13] : memref<3x512x512xbf16, #tpu.memory_space<vmem>>, vector<1x512x512xbf16>
    %30 = vector.shape_cast %29 : vector<1x512x512xbf16> to vector<512x512xbf16>
    %cst_14 = arith.constant dense<0.000000e+00> : vector<8x512xf32>
    %31 = tpu.matmul %28, %30, %cst_14 {dimension_numbers = #tpu.dot_dimension_numbers<[1], [0], [0], [1], [0, 0, 1, 1], [], []>} : vector<8x512xbf16>, vector<512x512xbf16>, vector<8x512xf32> -> vector<8x512xf32>
    %32 = vector.extract_strided_slice %11 {offsets = [1, 0], sizes = [1, 512], strides = [1, 1]} : vector<3x512xf32> to vector<1x512xf32>
    %33 = vector.shape_cast %32 : vector<1x512xf32> to vector<512xf32>
    %34 = vector.shape_cast %33 : vector<512xf32> to vector<1x512xf32>
    %35 = vector.broadcast %34 : vector<1x512xf32> to vector<8x512xf32>
    %36 = arith.addf %31, %35 : vector<8x512xf32>
    %cst_15 = arith.constant 0.000000e+00 : f32
    %37 = vector.broadcast %cst_15 : f32 to vector<8x512xf32>
    %38 = arith.cmpf oge, %36, %37 : vector<8x512xf32>
    %cst_16 = arith.constant 2.000000e-01 : f32
    %39 = vector.broadcast %cst_16 : f32 to vector<8x512xf32>
    %40 = arith.mulf %39, %36 : vector<8x512xf32>
    %41 = arith.select %38, %36, %40 : vector<8x512xi1>, vector<8x512xf32>
    %cst_17 = arith.constant 1.41421354 : f32
    %42 = vector.broadcast %cst_17 : f32 to vector<8x512xf32>
    %43 = arith.mulf %41, %42 : vector<8x512xf32>
    %44 = arith.truncf %43 : vector<8x512xf32> to vector<8x512xbf16>
    %c2 = arith.constant 2 : index
    %c0_18 = arith.constant 0 : index
    %c0_19 = arith.constant 0 : index
    %45 = vector.load %arg2[%c2, %c0_18, %c0_19] : memref<3x512x512xbf16, #tpu.memory_space<vmem>>, vector<1x512x512xbf16>
    %46 = vector.shape_cast %45 : vector<1x512x512xbf16> to vector<512x512xbf16>
    %cst_20 = arith.constant dense<0.000000e+00> : vector<8x512xf32>
    %47 = tpu.matmul %44, %46, %cst_20 {dimension_numbers = #tpu.dot_dimension_numbers<[1], [0], [0], [1], [0, 0, 1, 1], [], []>} : vector<8x512xbf16>, vector<512x512xbf16>, vector<8x512xf32> -> vector<8x512xf32>
    %48 = vector.extract_strided_slice %11 {offsets = [2, 0], sizes = [1, 512], strides = [1, 1]} : vector<3x512xf32> to vector<1x512xf32>
    %49 = vector.shape_cast %48 : vector<1x512xf32> to vector<512xf32>
    %50 = vector.shape_cast %49 : vector<512xf32> to vector<1x512xf32>
    %51 = vector.broadcast %50 : vector<1x512xf32> to vector<8x512xf32>
    %52 = arith.addf %47, %51 : vector<8x512xf32>
    %cst_21 = arith.constant 0.000000e+00 : f32
    %53 = vector.broadcast %cst_21 : f32 to vector<8x512xf32>
    %54 = arith.cmpf oge, %52, %53 : vector<8x512xf32>
    %cst_22 = arith.constant 2.000000e-01 : f32
    %55 = vector.broadcast %cst_22 : f32 to vector<8x512xf32>
    %56 = arith.mulf %55, %52 : vector<8x512xf32>
    %57 = arith.select %54, %52, %56 : vector<8x512xi1>, vector<8x512xf32>
    %cst_23 = arith.constant 1.41421354 : f32
    %58 = vector.broadcast %cst_23 : f32 to vector<8x512xf32>
    %59 = arith.mulf %57, %58 : vector<8x512xf32>
    %60 = arith.truncf %59 : vector<8x512xf32> to vector<8x512xbf16>
    %c0_24 = arith.constant 0 : index
    %c0_25 = arith.constant 0 : index
    %61 = vector.load %arg4[%c0_24, %c0_25] : memref<512x256xbf16, #tpu.memory_space<vmem>>, vector<512x256xbf16>
    %cst_26 = arith.constant dense<0.000000e+00> : vector<8x256xf32>
    %62 = tpu.matmul %60, %61, %cst_26 {dimension_numbers = #tpu.dot_dimension_numbers<[1], [0], [0], [1], [0, 0, 1, 1], [], []>} : vector<8x512xbf16>, vector<512x256xbf16>, vector<8x256xf32> -> vector<8x256xf32>
    %c0_27 = arith.constant 0 : index
    %c0_28 = arith.constant 0 : index
    %63 = vector.load %arg5[%c0_27, %c0_28] : memref<1x256xf32, #tpu.memory_space<vmem>>, vector<1x256xf32>
    %64 = vector.broadcast %63 : vector<1x256xf32> to vector<8x256xf32>
    %65 = arith.addf %62, %64 : vector<8x256xf32>
    %cst_29 = arith.constant 0.000000e+00 : f32
    %66 = vector.broadcast %cst_29 : f32 to vector<8x256xf32>
    %67 = arith.cmpf oge, %65, %66 : vector<8x256xf32>
    %cst_30 = arith.constant 2.000000e-01 : f32
    %68 = vector.broadcast %cst_30 : f32 to vector<8x256xf32>
    %69 = arith.mulf %68, %65 : vector<8x256xf32>
    %70 = arith.select %67, %65, %69 : vector<8x256xi1>, vector<8x256xf32>
    %cst_31 = arith.constant 1.41421354 : f32
    %71 = vector.broadcast %cst_31 : f32 to vector<8x256xf32>
    %72 = arith.mulf %70, %71 : vector<8x256xf32>
    %c0_32 = arith.constant 0 : index
    %c0_33 = arith.constant 0 : index
    %73 = vector.load %arg6[%c0_32, %c0_33] : memref<8x256xf32, #tpu.memory_space<vmem>>, vector<8x256xf32>
    tpu.vector_store %arg6[%c0_32, %c0_33], %72 {strides = array<i32>} : memref<8x256xf32, #tpu.memory_space<vmem>>, vector<8x256xf32>,
    return
  }
  func.func @transform_0(%arg0: i32) -> (i32, i32) {
    %c0_i32 = arith.constant 0 : i32
    %c0_i32_0 = arith.constant 0 : i32
    return %arg0, %c0_i32 : i32, i32
  }
  func.func @transform_1(%arg0: i32) -> (i32, i32, i32) {
    %c0_i32 = arith.constant 0 : i32
    %c0_i32_0 = arith.constant 0 : i32
    %c0_i32_1 = arith.constant 0 : i32
    %c0_i32_2 = arith.constant 0 : i32
    return %c0_i32, %c0_i32_0, %c0_i32_1 : i32, i32, i32
  }
  func.func @transform_2(%arg0: i32) -> (i32, i32) {
    %c0_i32 = arith.constant 0 : i32
    %c0_i32_0 = arith.constant 0 : i32
    %c0_i32_1 = arith.constant 0 : i32
    return %c0_i32, %c0_i32_0 : i32, i32
  }
  func.func @transform_3(%arg0: i32) -> (i32, i32) {
    %c0_i32 = arith.constant 0 : i32
    %c0_i32_0 = arith.constant 0 : i32
    %c0_i32_1 = arith.constant 0 : i32
    return %c0_i32, %c0_i32_0 : i32, i32
  }
  func.func @transform_4(%arg0: i32) -> (i32, i32) {
    %c0_i32 = arith.constant 0 : i32
    %c0_i32_0 = arith.constant 0 : i32
    %c0_i32_1 = arith.constant 0 : i32
    return %c0_i32, %c0_i32_0 : i32, i32
  }
  func.func @transform_5(%arg0: i32) -> (i32, i32) {
    %c0_i32 = arith.constant 0 : i32
    %c0_i32_0 = arith.constant 0 : i32
    return %arg0, %c0_i32 : i32, i32
  }
}

</mosaic_0001>

<llo_original>
// kernel: tpu_custom_call.1
$region0: #{tpu_custom_call.1}
  #allocation0 [shape = 'u32[]', space=smem, size = 0x4, offset = 0x4, fixed_abs, tag = 'smem constant byte address 0x4 - core index']
  #allocation1 [shape = 'u32[144,128]{1,0:T(1,128)}', space=vmem, size = 0x12000, scoped, tag = 'internal scratch']
  %s0 = inlined_call_operand.hbm [shape: f32[8,512], index: 0, kind: input, shape index: {}]
  %s1 = inlined_call_operand.hbm [shape: bf16[3,512,512], index: 1, kind: input, shape index: {}]
  %s2 = inlined_call_operand.hbm [shape: f32[3,512], index: 2, kind: input, shape index: {}]
  %s3 = inlined_call_operand.hbm [shape: bf16[512,256], index: 3, kind: input, shape index: {}]
  %s4 = inlined_call_operand.hbm [shape: f32[1,256], index: 4, kind: input, shape index: {}]
  %s5 = inlined_call_operand.hbm [shape: f32[8,256], index: 5, kind: output, shape index: {}]
  %s6 = sld [smem:[#allocation0]]
  $region50: #{tpu_custom_call.1} parent=0
    _
  %s8 = ssub.s32 1, %s6
  %s9 = scalar_select 0, %s8, %s6
  $region1: #{tpu_custom_call.1} parent=0
    #allocation2 [shape = 'u8[16384]{0}', space=vmem, size = 0x4000, scoped, tag = 'input window, operand 0, single buffered']
    #allocation3 [shape = 's32[1]{0}', space=sflag, size = 0x4, scoped, tag = 'scoped memory for tpu_custom_call.1']
    #allocation4 [shape = 's32[1]{0}', space=sflag, size = 0x4, scoped, tag = 'scoped memory for tpu_custom_call.1']
    #allocation5 [shape = 'u8[1572864]{0}', space=vmem, size = 0x180000, scoped, tag = 'input window, operand 1, single buffered']
    #allocation6 [shape = 's32[1]{0}', space=sflag, size = 0x4, scoped, tag = 'scoped memory for tpu_custom_call.1']
    #allocation7 [shape = 'u8[8192]{0}', space=vmem, size = 0x2000, scoped, tag = 'input window, operand 2, single buffered']
    #allocation8 [shape = 'u8[262144]{0}', space=vmem, size = 0x40000, scoped, tag = 'input window, operand 3, single buffered']
    #allocation9 [shape = 's32[1]{0}', space=sflag, size = 0x4, scoped, tag = 'scoped memory for tpu_custom_call.1']
    #allocation10 [shape = 'u8[1024]{0}', space=vmem, size = 0x400, scoped, tag = 'input window, operand 4, single buffered']
    #allocation11 [shape = 'u8[8192]{0}', space=vmem, size = 0x2000, scoped, tag = 'output window, operand 0, single buffered']
    %10 = vsyncpa [#allocation3], 0
    %11 = vsyncpa [#allocation6], 0
    %12 = vsyncpa [#allocation9], 0
    %13 = vsyncpa [#allocation4], 0
    // Predicated region
    $region2: #{tpu_custom_call.1} parent=1 // pred_check
      _
    $region3: #{tpu_custom_call.1} parent=1 // pred_check_branch
      %15 = sbr.rel (0) target = $region5
    $region4: #{tpu_custom_call.1} parent=1 // pred_region
      %s17 = ssub.s32 512, 512
      %18 = vsyncadd [#allocation3], %s17
      %s20 = sshll.u32 [#allocation2], 4
      %s21 = int_to_ptr.vmem [resolvable:$true] %s20
      %23 = dma.hbm_to_vmem [thread:$0]  %s0, 512, %s21, [#allocation3]
    $region5: #{tpu_custom_call.1} parent=1 // pred_fallthru
      _
    // Predicated region
    $region6: #{tpu_custom_call.1} parent=1 // pred_check
      _
    $region7: #{tpu_custom_call.1} parent=1 // pred_check_branch
      %25 = sbr.rel (0) target = $region9
    $region8: #{tpu_custom_call.1} parent=1 // pred_region
      %s27 = ssub.s32 49152, 49152
      %28 = vsyncadd [#allocation6], %s27
      %s29 = sshll.u32 [#allocation5], 4
      %s30 = int_to_ptr.vmem [resolvable:$true] %s29
      %35 = dma.hbm_to_vmem [thread:$0]  %s1, 49152, %s30, [#allocation6], 256, 256, 16
    $region9: #{tpu_custom_call.1} parent=1 // pred_fallthru
      _
    // Predicated region
    $region10: #{tpu_custom_call.1} parent=1 // pred_check
      _
    $region11: #{tpu_custom_call.1} parent=1 // pred_check_branch
      %37 = sbr.rel (0) target = $region13
    $region12: #{tpu_custom_call.1} parent=1 // pred_region
      %s39 = ssub.s32 256, 256
      %40 = vsyncadd [#allocation6], %s39
      %s42 = sshll.u32 [#allocation7], 4
      %s43 = int_to_ptr.vmem [resolvable:$true] %s42
      %45 = dma.hbm_to_vmem [thread:$0]  %s2, 256, %s43, [#allocation6]
    $region13: #{tpu_custom_call.1} parent=1 // pred_fallthru
      _
    // Predicated region
    $region14: #{tpu_custom_call.1} parent=1 // pred_check
      _
    $region15: #{tpu_custom_call.1} parent=1 // pred_check_branch
      %47 = sbr.rel (0) target = $region17
    $region16: #{tpu_custom_call.1} parent=1 // pred_region
      %s49 = ssub.s32 8192, 8192
      %50 = vsyncadd [#allocation9], %s49
      %s51 = sshll.u32 [#allocation8], 4
      %s52 = int_to_ptr.vmem [resolvable:$true] %s51
      %57 = dma.hbm_to_vmem [thread:$0]  %s3, 8192, %s52, [#allocation9], 128, 128, 8
    $region17: #{tpu_custom_call.1} parent=1 // pred_fallthru
      _
    // Predicated region
    $region18: #{tpu_custom_call.1} parent=1 // pred_check
      _
    $region19: #{tpu_custom_call.1} parent=1 // pred_check_branch
      %59 = sbr.rel (0) target = $region21
    $region20: #{tpu_custom_call.1} parent=1 // pred_region
      %s61 = ssub.s32 32, 32
      %62 = vsyncadd [#allocation9], %s61
      %s64 = sshll.u32 [#allocation10], 4
      %s65 = int_to_ptr.vmem [resolvable:$true] %s64
      %67 = dma.hbm_to_vmem [thread:$0]  %s4, 32, %s65, [#allocation9]
    $region21: #{tpu_custom_call.1} parent=1 // pred_fallthru
      _
    // Predicated region
    $region22: #{tpu_custom_call.1} parent=1 // pred_check
      _
    $region23: #{tpu_custom_call.1} parent=1 // pred_check_branch
      %69 = sbr.rel (0) target = $region25
    $region24: #{tpu_custom_call.1} parent=1 // pred_region
      %70 = dma.done [#allocation3], 512
    $region25: #{tpu_custom_call.1} parent=1 // pred_fallthru
      _
    // Predicated region
    $region26: #{tpu_custom_call.1} parent=1 // pred_check
      _
    $region27: #{tpu_custom_call.1} parent=1 // pred_check_branch
      %72 = sbr.rel (0) target = $region29
    $region28: #{tpu_custom_call.1} parent=1 // pred_region
      %73 = dma.done [#allocation6], 49152
    $region29: #{tpu_custom_call.1} parent=1 // pred_fallthru
      _
    // Predicated region
    $region30: #{tpu_custom_call.1} parent=1 // pred_check
      _
    $region31: #{tpu_custom_call.1} parent=1 // pred_check_branch
      %75 = sbr.rel (0) target = $region33
    $region32: #{tpu_custom_call.1} parent=1 // pred_region
      %76 = dma.done [#allocation6], 256
    $region33: #{tpu_custom_call.1} parent=1 // pred_fallthru
      _
    // Predicated region
    $region34: #{tpu_custom_call.1} parent=1 // pred_check
      _
    $region35: #{tpu_custom_call.1} parent=1 // pred_check_branch
      %78 = sbr.rel (0) target = $region37
    $region36: #{tpu_custom_call.1} parent=1 // pred_region
      %79 = dma.done [#allocation9], 8192
    $region37: #{tpu_custom_call.1} parent=1 // pred_fallthru
      _
    // Predicated region
    $region38: #{tpu_custom_call.1} parent=1 // pred_check
      _
    $region39: #{tpu_custom_call.1} parent=1 // pred_check_branch
      %81 = sbr.rel (0) target = $region41
    $region40: #{tpu_custom_call.1} parent=1 // pred_region
      %82 = dma.done [#allocation9], 32
    $region41: #{tpu_custom_call.1} parent=1 // pred_fallthru
      _
    %v83 = vld [vmem:[#allocation2] sm:$0xff]
    %v84 = vld [vmem:[#allocation2 + $0x8] sm:$0xff]
    %v85 = vld [vmem:[#allocation2 + $0x10] sm:$0xff]
    %v86 = vld [vmem:[#allocation2 + $0x18] sm:$0xff]
    %v87 = vmul.f32 %v83, %v83
    %v88 = vmul.f32 %v84, %v84
    %v89 = vmul.f32 %v85, %v85
    %v90 = vmul.f32 %v86, %v86
    %v91 = vadd.f32 %v87, %v88
    %v92 = vadd.f32 %v91, %v89
    %v93 = vadd.f32 %v92, %v90
    %94 = vadd.xlane.f32.xlu0 %v93
    %v95 = vpop.xlane.xlu0 %94
    %v96 = vrcp.pop 512.0
    %v97 = vmul.f32 %v95, %v96
    %v98 = vadd.f32 %v97, 1e-08
    %v99 = vrsqrt.pop %v98
    %v100 = vmul.f32 %v83, %v99
    %v101 = vmul.f32 %v84, %v99
    %v102 = vmul.f32 %v85, %v99
    %v103 = vmul.f32 %v86, %v99
    %v104 = vld [vmem:[#allocation7] sm:$0x77]
    %v105 = vld [vmem:[#allocation7 + $0x8] sm:$0x77]
    %v106 = vpack.c.bf16 %v100, %v100
    %v107 = vpack.c.bf16 %v101, %v101
    %v108 = vpack.c.bf16 %v102, %v102
    %v109 = vpack.c.bf16 %v103, %v103
    %v110 = vld [vmem:[#allocation5] sm:$0xff]
    %v111 = vld [vmem:[#allocation5 + $0x8] sm:$0xff]
    %v112 = vld [vmem:[#allocation5 + $0x10] sm:$0xff]
    %v113 = vld [vmem:[#allocation5 + $0x18] sm:$0xff]
    %v114 = vld [vmem:[#allocation5 + $0x20] sm:$0xff]
    %v115 = vld [vmem:[#allocation5 + $0x28] sm:$0xff]
    %v116 = vld [vmem:[#allocation5 + $0x30] sm:$0xff]
    %v117 = vld [vmem:[#allocation5 + $0x38] sm:$0xff]
    %v118 = vld [vmem:[#allocation5 + $0x40] sm:$0xff]
    %v119 = vld [vmem:[#allocation5 + $0x48] sm:$0xff]
    %v120 = vld [vmem:[#allocation5 + $0x50] sm:$0xff]
    %v121 = vld [vmem:[#allocation5 + $0x58] sm:$0xff]
    %v122 = vld [vmem:[#allocation5 + $0x60] sm:$0xff]
    %v123 = vld [vmem:[#allocation5 + $0x68] sm:$0xff]
    %v124 = vld [vmem:[#allocation5 + $0x70] sm:$0xff]
    %v125 = vld [vmem:[#allocation5 + $0x78] sm:$0xff]
    %v126 = vld [vmem:[#allocation5 + $0x80] sm:$0xff]
    %v127 = vld [vmem:[#allocation5 + $0x88] sm:$0xff]
    %v128 = vld [vmem:[#allocation5 + $0x90] sm:$0xff]
    %v129 = vld [vmem:[#allocation5 + $0x98] sm:$0xff]
    %v130 = vld [vmem:[#allocation5 + $0xa0] sm:$0xff]
    %v131 = vld [vmem:[#allocation5 + $0xa8] sm:$0xff]
    %v132 = vld [vmem:[#allocation5 + $0xb0] sm:$0xff]
    %v133 = vld [vmem:[#allocation5 + $0xb8] sm:$0xff]
    %v134 = vld [vmem:[#allocation5 + $0xc0] sm:$0xff]
    %v135 = vld [vmem:[#allocation5 + $0xc8] sm:$0xff]
    %v136 = vld [vmem:[#allocation5 + $0xd0] sm:$0xff]
    %v137 = vld [vmem:[#allocation5 + $0xd8] sm:$0xff]
    %v138 = vld [vmem:[#allocation5 + $0xe0] sm:$0xff]
    %v139 = vld [vmem:[#allocation5 + $0xe8] sm:$0xff]
    %v140 = vld [vmem:[#allocation5 + $0xf0] sm:$0xff]
    %v141 = vld [vmem:[#allocation5 + $0xf8] sm:$0xff]
    %v142 = vld [vmem:[#allocation5 + $0x100] sm:$0xff]
    %v143 = vld [vmem:[#allocation5 + $0x108] sm:$0xff]
    %v144 = vld [vmem:[#allocation5 + $0x110] sm:$0xff]
    %v145 = vld [vmem:[#allocation5 + $0x118] sm:$0xff]
    %v146 = vld [vmem:[#allocation5 + $0x120] sm:$0xff]
    %v147 = vld [vmem:[#allocation5 + $0x128] sm:$0xff]
    %v148 = vld [vmem:[#allocation5 + $0x130] sm:$0xff]
    %v149 = vld [vmem:[#allocation5 + $0x138] sm:$0xff]
    %v150 = vld [vmem:[#allocation5 + $0x140] sm:$0xff]
    %v151 = vld [vmem:[#allocation5 + $0x148] sm:$0xff]
    %v152 = vld [vmem:[#allocation5 + $0x150] sm:$0xff]
    %v153 = vld [vmem:[#allocation5 + $0x158] sm:$0xff]
    %v154 = vld [vmem:[#allocation5 + $0x160] sm:$0xff]
    %v155 = vld [vmem:[#allocation5 + $0x168] sm:$0xff]
    %v156 = vld [vmem:[#allocation5 + $0x170] sm:$0xff]
    %v157 = vld [vmem:[#allocation5 + $0x178] sm:$0xff]
    %v158 = vld [vmem:[#allocation5 + $0x180] sm:$0xff]
    %v159 = vld [vmem:[#allocation5 + $0x188] sm:$0xff]
    %v160 = vld [vmem:[#allocation5 + $0x190] sm:$0xff]
    %v161 = vld [vmem:[#allocation5 + $0x198] sm:$0xff]
    %v162 = vld [vmem:[#allocation5 + $0x1a0] sm:$0xff]
    %v163 = vld [vmem:[#allocation5 + $0x1a8] sm:$0xff]
    %v164 = vld [vmem:[#allocation5 + $0x1b0] sm:$0xff]
    %v165 = vld [vmem:[#allocation5 + $0x1b8] sm:$0xff]
    %v166 = vld [vmem:[#allocation5 + $0x1c0] sm:$0xff]
    %v167 = vld [vmem:[#allocation5 + $0x1c8] sm:$0xff]
    %v168 = vld [vmem:[#allocation5 + $0x1d0] sm:$0xff]
    %v169 = vld [vmem:[#allocation5 + $0x1d8] sm:$0xff]
    %v170 = vld [vmem:[#allocation5 + $0x1e0] sm:$0xff]
    %v171 = vld [vmem:[#allocation5 + $0x1e8] sm:$0xff]
    %v172 = vld [vmem:[#allocation5 + $0x1f0] sm:$0xff]
    %v173 = vld [vmem:[#allocation5 + $0x1f8] sm:$0xff]
    %v174 = vld [vmem:[#allocation5 + $0x200] sm:$0xff]
    %v175 = vld [vmem:[#allocation5 + $0x208] sm:$0xff]
    %v176 = vld [vmem:[#allocation5 + $0x210] sm:$0xff]
    %v177 = vld [vmem:[#allocation5 + $0x218] sm:$0xff]
    %v178 = vld [vmem:[#allocation5 + $0x220] sm:$0xff]
    %v179 = vld [vmem:[#allocation5 + $0x228] sm:$0xff]
    %v180 = vld [vmem:[#allocation5 + $0x230] sm:$0xff]
    %v181 = vld [vmem:[#allocation5 + $0x238] sm:$0xff]
    %v182 = vld [vmem:[#allocation5 + $0x240] sm:$0xff]
    %v183 = vld [vmem:[#allocation5 + $0x248] sm:$0xff]
    %v184 = vld [vmem:[#allocation5 + $0x250] sm:$0xff]
    %v185 = vld [vmem:[#allocation5 + $0x258] sm:$0xff]
    %v186 = vld [vmem:[#allocation5 + $0x260] sm:$0xff]
    %v187 = vld [vmem:[#allocation5 + $0x268] sm:$0xff]
    %v188 = vld [vmem:[#allocation5 + $0x270] sm:$0xff]
    %v189 = vld [vmem:[#allocation5 + $0x278] sm:$0xff]
    %v190 = vld [vmem:[#allocation5 + $0x280] sm:$0xff]
    %v191 = vld [vmem:[#allocation5 + $0x288] sm:$0xff]
    %v192 = vld [vmem:[#allocation5 + $0x290] sm:$0xff]
    %v193 = vld [vmem:[#allocation5 + $0x298] sm:$0xff]
    %v194 = vld [vmem:[#allocation5 + $0x2a0] sm:$0xff]
    %v195 = vld [vmem:[#allocation5 + $0x2a8] sm:$0xff]
    %v196 = vld [vmem:[#allocation5 + $0x2b0] sm:$0xff]
    %v197 = vld [vmem:[#allocation5 + $0x2b8] sm:$0xff]
    %v198 = vld [vmem:[#allocation5 + $0x2c0] sm:$0xff]
    %v199 = vld [vmem:[#allocation5 + $0x2c8] sm:$0xff]
    %v200 = vld [vmem:[#allocation5 + $0x2d0] sm:$0xff]
    %v201 = vld [vmem:[#allocation5 + $0x2d8] sm:$0xff]
    %v202 = vld [vmem:[#allocation5 + $0x2e0] sm:$0xff]
    %v203 = vld [vmem:[#allocation5 + $0x2e8] sm:$0xff]
    %v204 = vld [vmem:[#allocation5 + $0x2f0] sm:$0xff]
    %v205 = vld [vmem:[#allocation5 + $0x2f8] sm:$0xff]
    %v206 = vld [vmem:[#allocation5 + $0x300] sm:$0xff]
    %v207 = vld [vmem:[#allocation5 + $0x308] sm:$0xff]
    %v208 = vld [vmem:[#allocation5 + $0x310] sm:$0xff]
    %v209 = vld [vmem:[#allocation5 + $0x318] sm:$0xff]
    %v210 = vld [vmem:[#allocation5 + $0x320] sm:$0xff]
    %v211 = vld [vmem:[#allocation5 + $0x328] sm:$0xff]
    %v212 = vld [vmem:[#allocation5 + $0x330] sm:$0xff]
    %v213 = vld [vmem:[#allocation5 + $0x338] sm:$0xff]
    %v214 = vld [vmem:[#allocation5 + $0x340] sm:$0xff]
    %v215 = vld [vmem:[#allocation5 + $0x348] sm:$0xff]
    %v216 = vld [vmem:[#allocation5 + $0x350] sm:$0xff]
    %v217 = vld [vmem:[#allocation5 + $0x358] sm:$0xff]
    %v218 = vld [vmem:[#allocation5 + $0x360] sm:$0xff]
    %v219 = vld [vmem:[#allocation5 + $0x368] sm:$0xff]
    %v220 = vld [vmem:[#allocation5 + $0x370] sm:$0xff]
    %v221 = vld [vmem:[#allocation5 + $0x378] sm:$0xff]
    %v222 = vld [vmem:[#allocation5 + $0x380] sm:$0xff]
    %v223 = vld [vmem:[#allocation5 + $0x388] sm:$0xff]
    %v224 = vld [vmem:[#allocation5 + $0x390] sm:$0xff]
    %v225 = vld [vmem:[#allocation5 + $0x398] sm:$0xff]
    %v226 = vld [vmem:[#allocation5 + $0x3a0] sm:$0xff]
    %v227 = vld [vmem:[#allocation5 + $0x3a8] sm:$0xff]
    %v228 = vld [vmem:[#allocation5 + $0x3b0] sm:$0xff]
    %v229 = vld [vmem:[#allocation5 + $0x3b8] sm:$0xff]
    %v230 = vld [vmem:[#allocation5 + $0x3c0] sm:$0xff]
    %v231 = vld [vmem:[#allocation5 + $0x3c8] sm:$0xff]
    %v232 = vld [vmem:[#allocation5 + $0x3d0] sm:$0xff]
    %v233 = vld [vmem:[#allocation5 + $0x3d8] sm:$0xff]
    %v234 = vld [vmem:[#allocation5 + $0x3e0] sm:$0xff]
    %v235 = vld [vmem:[#allocation5 + $0x3e8] sm:$0xff]
    %v236 = vld [vmem:[#allocation5 + $0x3f0] sm:$0xff]
    %v237 = vld [vmem:[#allocation5 + $0x3f8] sm:$0xff]
    %v240 = vlaneseq
    %v241 = vshrl.u32 %v240, 7
    %v242 = vsub.s32 0, %v241
    %v243 = vrot.slane %v104, %v242
    %v244 = vlaneseq
    %v245 = vshrl.u32 %v244, 7
    %v246 = vsub.s32 4, %v245
    %v247 = vrot.slane %v104, %v246
    %v248 = vlaneseq
    %v249 = vshrl.u32 %v248, 7
    %v250 = vsub.s32 0, %v249
    %v251 = vrot.slane %v105, %v250
    %v252 = vlaneseq
    %v253 = vshrl.u32 %v252, 7
    %v254 = vsub.s32 4, %v253
    %v255 = vrot.slane %v105, %v254
    %v260 = vlaneseq
    %v261 = vshrl.u32 %v260, 7
    %v262 = vsub.s32 0, %v261
    %v263 = vrot.slane %v243, %v262
    %v264 = vlaneseq
    %v265 = vshrl.u32 %v264, 7
    %v266 = vsub.s32 0, %v265
    %v267 = vrot.slane %v247, %v266
    %v268 = vlaneseq
    %v269 = vshrl.u32 %v268, 7
    %v270 = vsub.s32 0, %v269
    %v271 = vrot.slane %v251, %v270
    %v272 = vlaneseq
    %v273 = vshrl.u32 %v272, 7
    %v274 = vsub.s32 0, %v273
    %v275 = vrot.slane %v255, %v274
    %v404 = vunpack.c.l.b16 %v110
    %v405 = vunpack.c.h.b16 %v110
    %v406 = vunpack.c.l.b16 %v111
    %v407 = vunpack.c.h.b16 %v111
    %v408 = vunpack.c.l.b16 %v112
    %v409 = vunpack.c.h.b16 %v112
    %v410 = vunpack.c.l.b16 %v113
    %v411 = vunpack.c.h.b16 %v113
    %v412 = vunpack.c.l.b16 %v114
    %v413 = vunpack.c.h.b16 %v114
    %v414 = vunpack.c.l.b16 %v115
    %v415 = vunpack.c.h.b16 %v115
    %v416 = vunpack.c.l.b16 %v116
    %v417 = vunpack.c.h.b16 %v116
    %v418 = vunpack.c.l.b16 %v117
    %v419 = vunpack.c.h.b16 %v117
    %v420 = vunpack.c.l.b16 %v118
    %v421 = vunpack.c.h.b16 %v118
    %v422 = vunpack.c.l.b16 %v119
    %v423 = vunpack.c.h.b16 %v119
    %v424 = vunpack.c.l.b16 %v120
    %v425 = vunpack.c.h.b16 %v120
    %v426 = vunpack.c.l.b16 %v121
    %v427 = vunpack.c.h.b16 %v121
    %v428 = vunpack.c.l.b16 %v122
    %v429 = vunpack.c.h.b16 %v122
    %v430 = vunpack.c.l.b16 %v123
    %v431 = vunpack.c.h.b16 %v123
    %v432 = vunpack.c.l.b16 %v124
    %v433 = vunpack.c.h.b16 %v124
    %v434 = vunpack.c.l.b16 %v125
    %v435 = vunpack.c.h.b16 %v125
    %v436 = vunpack.c.l.b16 %v126
    %v437 = vunpack.c.h.b16 %v126
    %v438 = vunpack.c.l.b16 %v127
    %v439 = vunpack.c.h.b16 %v127
    %v440 = vunpack.c.l.b16 %v128
    %v441 = vunpack.c.h.b16 %v128
    %v442 = vunpack.c.l.b16 %v129
    %v443 = vunpack.c.h.b16 %v129
    %v444 = vunpack.c.l.b16 %v130
    %v445 = vunpack.c.h.b16 %v130
    %v446 = vunpack.c.l.b16 %v131
    %v447 = vunpack.c.h.b16 %v131
    %v448 = vunpack.c.l.b16 %v132
    %v449 = vunpack.c.h.b16 %v132
    %v450 = vunpack.c.l.b16 %v133
    %v451 = vunpack.c.h.b16 %v133
    %v452 = vunpack.c.l.b16 %v134
    %v453 = vunpack.c.h.b16 %v134
    %v454 = vunpack.c.l.b16 %v135
    %v455 = vunpack.c.h.b16 %v135
    %v456 = vunpack.c.l.b16 %v136
    %v457 = vunpack.c.h.b16 %v136
    %v458 = vunpack.c.l.b16 %v137
    %v459 = vunpack.c.h.b16 %v137
    %v460 = vunpack.c.l.b16 %v138
    %v461 = vunpack.c.h.b16 %v138
    %v462 = vunpack.c.l.b16 %v139
    %v463 = vunpack.c.h.b16 %v139
    %v464 = vunpack.c.l.b16 %v140
    %v465 = vunpack.c.h.b16 %v140
    %v466 = vunpack.c.l.b16 %v141
    %v467 = vunpack.c.h.b16 %v141
    %v468 = vunpack.c.l.b16 %v142
    %v469 = vunpack.c.h.b16 %v142
    %v470 = vunpack.c.l.b16 %v143
    %v471 = vunpack.c.h.b16 %v143
    %v472 = vunpack.c.l.b16 %v144
    %v473 = vunpack.c.h.b16 %v144
    %v474 = vunpack.c.l.b16 %v145
    %v475 = vunpack.c.h.b16 %v145
    %v476 = vunpack.c.l.b16 %v146
    %v477 = vunpack.c.h.b16 %v146
    %v478 = vunpack.c.l.b16 %v147
    %v479 = vunpack.c.h.b16 %v147
    %v480 = vunpack.c.l.b16 %v148
    %v481 = vunpack.c.h.b16 %v148
    %v482 = vunpack.c.l.b16 %v149
    %v483 = vunpack.c.h.b16 %v149
    %v484 = vunpack.c.l.b16 %v150
    %v485 = vunpack.c.h.b16 %v150
    %v486 = vunpack.c.l.b16 %v151
    %v487 = vunpack.c.h.b16 %v151
    %v488 = vunpack.c.l.b16 %v152
    %v489 = vunpack.c.h.b16 %v152
    %v490 = vunpack.c.l.b16 %v153
    %v491 = vunpack.c.h.b16 %v153
    %v492 = vunpack.c.l.b16 %v154
    %v493 = vunpack.c.h.b16 %v154
    %v494 = vunpack.c.l.b16 %v155
    %v495 = vunpack.c.h.b16 %v155
    %v496 = vunpack.c.l.b16 %v156
    %v497 = vunpack.c.h.b16 %v156
    %v498 = vunpack.c.l.b16 %v157
    %v499 = vunpack.c.h.b16 %v157
    %v500 = vunpack.c.l.b16 %v158
    %v501 = vunpack.c.h.b16 %v158
    %v502 = vunpack.c.l.b16 %v159
    %v503 = vunpack.c.h.b16 %v159
    %v504 = vunpack.c.l.b16 %v160
    %v505 = vunpack.c.h.b16 %v160
    %v506 = vunpack.c.l.b16 %v161
    %v507 = vunpack.c.h.b16 %v161
    %v508 = vunpack.c.l.b16 %v162
    %v509 = vunpack.c.h.b16 %v162
    %v510 = vunpack.c.l.b16 %v163
    %v511 = vunpack.c.h.b16 %v163
    %v512 = vunpack.c.l.b16 %v164
    %v513 = vunpack.c.h.b16 %v164
    %v514 = vunpack.c.l.b16 %v165
    %v515 = vunpack.c.h.b16 %v165
    %v516 = vunpack.c.l.b16 %v166
    %v517 = vunpack.c.h.b16 %v166
    %v518 = vunpack.c.l.b16 %v167
    %v519 = vunpack.c.h.b16 %v167
    %v520 = vunpack.c.l.b16 %v168
    %v521 = vunpack.c.h.b16 %v168
    %v522 = vunpack.c.l.b16 %v169
    %v523 = vunpack.c.h.b16 %v169
    %v524 = vunpack.c.l.b16 %v170
    %v525 = vunpack.c.h.b16 %v170
    %v526 = vunpack.c.l.b16 %v171
    %v527 = vunpack.c.h.b16 %v171
    %v528 = vunpack.c.l.b16 %v172
    %v529 = vunpack.c.h.b16 %v172
    %v530 = vunpack.c.l.b16 %v173
    %v531 = vunpack.c.h.b16 %v173
    %v532 = vunpack.c.l.b16 %v174
    %v533 = vunpack.c.h.b16 %v174
    %v534 = vunpack.c.l.b16 %v175
    %v535 = vunpack.c.h.b16 %v175
    %v536 = vunpack.c.l.b16 %v176
    %v537 = vunpack.c.h.b16 %v176
    %v538 = vunpack.c.l.b16 %v177
    %v539 = vunpack.c.h.b16 %v177
    %v540 = vunpack.c.l.b16 %v178
    %v541 = vunpack.c.h.b16 %v178
    %v542 = vunpack.c.l.b16 %v179
    %v543 = vunpack.c.h.b16 %v179
    %v544 = vunpack.c.l.b16 %v180
    %v545 = vunpack.c.h.b16 %v180
    %v546 = vunpack.c.l.b16 %v181
    %v547 = vunpack.c.h.b16 %v181
    %v548 = vunpack.c.l.b16 %v182
    %v549 = vunpack.c.h.b16 %v182
    %v550 = vunpack.c.l.b16 %v183
    %v551 = vunpack.c.h.b16 %v183
    %v552 = vunpack.c.l.b16 %v184
    %v553 = vunpack.c.h.b16 %v184
    %v554 = vunpack.c.l.b16 %v185
    %v555 = vunpack.c.h.b16 %v185
    %v556 = vunpack.c.l.b16 %v186
    %v557 = vunpack.c.h.b16 %v186
    %v558 = vunpack.c.l.b16 %v187
    %v559 = vunpack.c.h.b16 %v187
    %v560 = vunpack.c.l.b16 %v188
    %v561 = vunpack.c.h.b16 %v188
    %v562 = vunpack.c.l.b16 %v189
    %v563 = vunpack.c.h.b16 %v189
    %v564 = vunpack.c.l.b16 %v190
    %v565 = vunpack.c.h.b16 %v190
    %v566 = vunpack.c.l.b16 %v191
    %v567 = vunpack.c.h.b16 %v191
    %v568 = vunpack.c.l.b16 %v192
    %v569 = vunpack.c.h.b16 %v192
    %v570 = vunpack.c.l.b16 %v193
    %v571 = vunpack.c.h.b16 %v193
    %v572 = vunpack.c.l.b16 %v194
    %v573 = vunpack.c.h.b16 %v194
    %v574 = vunpack.c.l.b16 %v195
    %v575 = vunpack.c.h.b16 %v195
    %v576 = vunpack.c.l.b16 %v196
    %v577 = vunpack.c.h.b16 %v196
    %v578 = vunpack.c.l.b16 %v197
    %v579 = vunpack.c.h.b16 %v197
    %v580 = vunpack.c.l.b16 %v198
    %v581 = vunpack.c.h.b16 %v198
    %v582 = vunpack.c.l.b16 %v199
    %v583 = vunpack.c.h.b16 %v199
    %v584 = vunpack.c.l.b16 %v200
    %v585 = vunpack.c.h.b16 %v200
    %v586 = vunpack.c.l.b16 %v201
    %v587 = vunpack.c.h.b16 %v201
    %v588 = vunpack.c.l.b16 %v202
    %v589 = vunpack.c.h.b16 %v202
    %v590 = vunpack.c.l.b16 %v203
    %v591 = vunpack.c.h.b16 %v203
    %v592 = vunpack.c.l.b16 %v204
    %v593 = vunpack.c.h.b16 %v204
    %v594 = vunpack.c.l.b16 %v205
    %v595 = vunpack.c.h.b16 %v205
    %v596 = vunpack.c.l.b16 %v206
    %v597 = vunpack.c.h.b16 %v206
    %v598 = vunpack.c.l.b16 %v207
    %v599 = vunpack.c.h.b16 %v207
    %v600 = vunpack.c.l.b16 %v208
    %v601 = vunpack.c.h.b16 %v208
    %v602 = vunpack.c.l.b16 %v209
    %v603 = vunpack.c.h.b16 %v209
    %v604 = vunpack.c.l.b16 %v210
    %v605 = vunpack.c.h.b16 %v210
    %v606 = vunpack.c.l.b16 %v211
    %v607 = vunpack.c.h.b16 %v211
    %v608 = vunpack.c.l.b16 %v212
    %v609 = vunpack.c.h.b16 %v212
    %v610 = vunpack.c.l.b16 %v213
    %v611 = vunpack.c.h.b16 %v213
    %v612 = vunpack.c.l.b16 %v214
    %v613 = vunpack.c.h.b16 %v214
    %v614 = vunpack.c.l.b16 %v215
    %v615 = vunpack.c.h.b16 %v215
    %v616 = vunpack.c.l.b16 %v216
    %v617 = vunpack.c.h.b16 %v216
    %v618 = vunpack.c.l.b16 %v217
    %v619 = vunpack.c.h.b16 %v217
    %v620 = vunpack.c.l.b16 %v218
    %v621 = vunpack.c.h.b16 %v218
    %v622 = vunpack.c.l.b16 %v219
    %v623 = vunpack.c.h.b16 %v219
    %v624 = vunpack.c.l.b16 %v220
    %v625 = vunpack.c.h.b16 %v220
    %v626 = vunpack.c.l.b16 %v221
    %v627 = vunpack.c.h.b16 %v221
    %v628 = vunpack.c.l.b16 %v222
    %v629 = vunpack.c.h.b16 %v222
    %v630 = vunpack.c.l.b16 %v223
    %v631 = vunpack.c.h.b16 %v223
    %v632 = vunpack.c.l.b16 %v224
    %v633 = vunpack.c.h.b16 %v224
    %v634 = vunpack.c.l.b16 %v225
    %v635 = vunpack.c.h.b16 %v225
    %v636 = vunpack.c.l.b16 %v226
    %v637 = vunpack.c.h.b16 %v226
    %v638 = vunpack.c.l.b16 %v227
    %v639 = vunpack.c.h.b16 %v227
    %v640 = vunpack.c.l.b16 %v228
    %v641 = vunpack.c.h.b16 %v228
    %v642 = vunpack.c.l.b16 %v229
    %v643 = vunpack.c.h.b16 %v229
    %v644 = vunpack.c.l.b16 %v230
    %v645 = vunpack.c.h.b16 %v230
    %v646 = vunpack.c.l.b16 %v231
    %v647 = vunpack.c.h.b16 %v231
    %v648 = vunpack.c.l.b16 %v232
    %v649 = vunpack.c.h.b16 %v232
    %v650 = vunpack.c.l.b16 %v233
    %v651 = vunpack.c.h.b16 %v233
    %v652 = vunpack.c.l.b16 %v234
    %v653 = vunpack.c.h.b16 %v234
    %v654 = vunpack.c.l.b16 %v235
    %v655 = vunpack.c.h.b16 %v235
    %v656 = vunpack.c.l.b16 %v236
    %v657 = vunpack.c.h.b16 %v236
    %v658 = vunpack.c.l.b16 %v237
    %v659 = vunpack.c.h.b16 %v237
    %v660 = vpack.c.b16 %v408, %v404
    %v661 = vpack.c.b16 %v409, %v405
    %v662 = vpack.c.b16 %v410, %v406
    %v663 = vpack.c.b16 %v411, %v407
    %v664 = vpack.c.b16 %v416, %v412
    %v665 = vpack.c.b16 %v417, %v413
    %v666 = vpack.c.b16 %v418, %v414
    %v667 = vpack.c.b16 %v419, %v415
    %v668 = vpack.c.b16 %v424, %v420
    %v669 = vpack.c.b16 %v425, %v421
    %v670 = vpack.c.b16 %v426, %v422
    %v671 = vpack.c.b16 %v427, %v423
    %v672 = vpack.c.b16 %v432, %v428
    %v673 = vpack.c.b16 %v433, %v429
    %v674 = vpack.c.b16 %v434, %v430
    %v675 = vpack.c.b16 %v435, %v431
    %v676 = vpack.c.b16 %v440, %v436
    %v677 = vpack.c.b16 %v441, %v437
    %v678 = vpack.c.b16 %v442, %v438
    %v679 = vpack.c.b16 %v443, %v439
    %v680 = vpack.c.b16 %v448, %v444
    %v681 = vpack.c.b16 %v449, %v445
    %v682 = vpack.c.b16 %v450, %v446
    %v683 = vpack.c.b16 %v451, %v447
    %v684 = vpack.c.b16 %v456, %v452
    %v685 = vpack.c.b16 %v457, %v453
    %v686 = vpack.c.b16 %v458, %v454
    %v687 = vpack.c.b16 %v459, %v455
    %v688 = vpack.c.b16 %v464, %v460
    %v689 = vpack.c.b16 %v465, %v461
    %v690 = vpack.c.b16 %v466, %v462
    %v691 = vpack.c.b16 %v467, %v463
    %v692 = vpack.c.b16 %v472, %v468
    %v693 = vpack.c.b16 %v473, %v469
    %v694 = vpack.c.b16 %v474, %v470
    %v695 = vpack.c.b16 %v475, %v471
    %v696 = vpack.c.b16 %v480, %v476
    %v697 = vpack.c.b16 %v481, %v477
    %v698 = vpack.c.b16 %v482, %v478
    %v699 = vpack.c.b16 %v483, %v479
    %v700 = vpack.c.b16 %v488, %v484
    %v701 = vpack.c.b16 %v489, %v485
    %v702 = vpack.c.b16 %v490, %v486
    %v703 = vpack.c.b16 %v491, %v487
    %v704 = vpack.c.b16 %v496, %v492
    %v705 = vpack.c.b16 %v497, %v493
    %v706 = vpack.c.b16 %v498, %v494
    %v707 = vpack.c.b16 %v499, %v495
    %v708 = vpack.c.b16 %v504, %v500
    %v709 = vpack.c.b16 %v505, %v501
    %v710 = vpack.c.b16 %v506, %v502
    %v711 = vpack.c.b16 %v507, %v503
    %v712 = vpack.c.b16 %v512, %v508
    %v713 = vpack.c.b16 %v513, %v509
    %v714 = vpack.c.b16 %v514, %v510
    %v715 = vpack.c.b16 %v515, %v511
    %v716 = vpack.c.b16 %v520, %v516
    %v717 = vpack.c.b16 %v521, %v517
    %v718 = vpack.c.b16 %v522, %v518
    %v719 = vpack.c.b16 %v523, %v519
    %v720 = vpack.c.b16 %v528, %v524
    %v721 = vpack.c.b16 %v529, %v525
    %v722 = vpack.c.b16 %v530, %v526
    %v723 = vpack.c.b16 %v531, %v527
    %v724 = vpack.c.b16 %v536, %v532
    %v725 = vpack.c.b16 %v537, %v533
    %v726 = vpack.c.b16 %v538, %v534
    %v727 = vpack.c.b16 %v539, %v535
    %v728 = vpack.c.b16 %v544, %v540
    %v729 = vpack.c.b16 %v545, %v541
    %v730 = vpack.c.b16 %v546, %v542
    %v731 = vpack.c.b16 %v547, %v543
    %v732 = vpack.c.b16 %v552, %v548
    %v733 = vpack.c.b16 %v553, %v549
    %v734 = vpack.c.b16 %v554, %v550
    %v735 = vpack.c.b16 %v555, %v551
    %v736 = vpack.c.b16 %v560, %v556
    %v737 = vpack.c.b16 %v561, %v557
    %v738 = vpack.c.b16 %v562, %v558
    %v739 = vpack.c.b16 %v563, %v559
    %v740 = vpack.c.b16 %v568, %v564
    %v741 = vpack.c.b16 %v569, %v565
    %v742 = vpack.c.b16 %v570, %v566
    %v743 = vpack.c.b16 %v571, %v567
    %v744 = vpack.c.b16 %v576, %v572
    %v745 = vpack.c.b16 %v577, %v573
    %v746 = vpack.c.b16 %v578, %v574
    %v747 = vpack.c.b16 %v579, %v575
    %v748 = vpack.c.b16 %v584, %v580
    %v749 = vpack.c.b16 %v585, %v581
    %v750 = vpack.c.b16 %v586, %v582
    %v751 = vpack.c.b16 %v587, %v583
    %v752 = vpack.c.b16 %v592, %v588
    %v753 = vpack.c.b16 %v593, %v589
    %v754 = vpack.c.b16 %v594, %v590
    %v755 = vpack.c.b16 %v595, %v591
    %v756 = vpack.c.b16 %v600, %v596
    %v757 = vpack.c.b16 %v601, %v597
    %v758 = vpack.c.b16 %v602, %v598
    %v759 = vpack.c.b16 %v603, %v599
    %v760 = vpack.c.b16 %v608, %v604
    %v761 = vpack.c.b16 %v609, %v605
    %v762 = vpack.c.b16 %v610, %v606
    %v763 = vpack.c.b16 %v611, %v607
    %v764 = vpack.c.b16 %v616, %v612
    %v765 = vpack.c.b16 %v617, %v613
    %v766 = vpack.c.b16 %v618, %v614
    %v767 = vpack.c.b16 %v619, %v615
    %v768 = vpack.c.b16 %v624, %v620
    %v769 = vpack.c.b16 %v625, %v621
    %v770 = vpack.c.b16 %v626, %v622
    %v771 = vpack.c.b16 %v627, %v623
    %v772 = vpack.c.b16 %v632, %v628
    %v773 = vpack.c.b16 %v633, %v629
    %v774 = vpack.c.b16 %v634, %v630
    %v775 = vpack.c.b16 %v635, %v631
    %v776 = vpack.c.b16 %v640, %v636
    %v777 = vpack.c.b16 %v641, %v637
    %v778 = vpack.c.b16 %v642, %v638
    %v779 = vpack.c.b16 %v643, %v639
    %v780 = vpack.c.b16 %v648, %v644
    %v781 = vpack.c.b16 %v649, %v645
    %v782 = vpack.c.b16 %v650, %v646
    %v783 = vpack.c.b16 %v651, %v647
    %v784 = vpack.c.b16 %v656, %v652
    %v785 = vpack.c.b16 %v657, %v653
    %v786 = vpack.c.b16 %v658, %v654
    %v787 = vpack.c.b16 %v659, %v655
    %916 = vmatprep.subr.bf16.mxu0 %v661
    %917 = vmatpush1.bf16.msra.mxu0 %v660
    %918 = vmatprep.subr.bf16.mxu0 %v665
    %919 = vmatpush1.bf16.msra.mxu0 %v664
    %920 = vmatprep.subr.bf16.mxu0 %v669
    %921 = vmatpush1.bf16.msra.mxu0 %v668
    %922 = vmatprep.subr.bf16.mxu0 %v673
    %923 = vmatpush1.bf16.msra.mxu0 %v672
    %924 = vmatprep.subr.bf16.mxu0 %v677
    %925 = vmatpush1.bf16.msra.mxu0 %v676
    %926 = vmatprep.subr.bf16.mxu0 %v681
    %927 = vmatpush1.bf16.msra.mxu0 %v680
    %928 = vmatprep.subr.bf16.mxu0 %v685
    %929 = vmatpush1.bf16.msra.mxu0 %v684
    %930 = vmatprep.subr.bf16.mxu0 %v689
    %931 = vmatpush1.bf16.msra.mxu0 %v688
    %932 = vmatprep.subr.bf16.mxu0 %v693
    %933 = vmatpush1.bf16.msra.mxu0 %v692
    %934 = vmatprep.subr.bf16.mxu0 %v697
    %935 = vmatpush1.bf16.msra.mxu0 %v696
    %936 = vmatprep.subr.bf16.mxu0 %v701
    %937 = vmatpush1.bf16.msra.mxu0 %v700
    %938 = vmatprep.subr.bf16.mxu0 %v705
    %939 = vmatpush1.bf16.msra.mxu0 %v704
    %940 = vmatprep.subr.bf16.mxu0 %v709
    %941 = vmatpush1.bf16.msra.mxu0 %v708
    %942 = vmatprep.subr.bf16.mxu0 %v713
    %943 = vmatpush1.bf16.msra.mxu0 %v712
    %944 = vmatprep.subr.bf16.mxu0 %v717
    %945 = vmatpush1.bf16.msra.mxu0 %v716
    %946 = vmatprep.subr.bf16.mxu0 %v721
    %947 = vmatpush1.bf16.msra.mxu0 %v720
    %948 = vmatprep.mubr.bf16.mxu0 %v107
    %949 = vmatmul.mubr.bf16.gmra.mrb[0].mxu0 %v106
    %v950 = vpop.f32.mrb[0].mxu0
    %v951 = vadd.f32 %v263, %v950
    %v952 = vpop.f32.mrb[0].mxu0
    %v953 = vadd.f32 %v267, %v952
    %v954 = vpop.f32.mrb[0].mxu0
    %v955 = vpop.f32.mrb[0].mxu0
    %956 = vdwg.mxu0
    %957 = vmatprep.subr.bf16.mxu0 %v725
    %958 = vmatpush1.bf16.msra.mxu0 %v724
    %959 = vmatprep.subr.bf16.mxu0 %v729
    %960 = vmatpush1.bf16.msra.mxu0 %v728
    %961 = vmatprep.subr.bf16.mxu0 %v733
    %962 = vmatpush1.bf16.msra.mxu0 %v732
    %963 = vmatprep.subr.bf16.mxu0 %v737
    %964 = vmatpush1.bf16.msra.mxu0 %v736
    %965 = vmatprep.subr.bf16.mxu0 %v741
    %966 = vmatpush1.bf16.msra.mxu0 %v740
    %967 = vmatprep.subr.bf16.mxu0 %v745
    %968 = vmatpush1.bf16.msra.mxu0 %v744
    %969 = vmatprep.subr.bf16.mxu0 %v749
    %970 = vmatpush1.bf16.msra.mxu0 %v748
    %971 = vmatprep.subr.bf16.mxu0 %v753
    %972 = vmatpush1.bf16.msra.mxu0 %v752
    %973 = vmatprep.subr.bf16.mxu0 %v757
    %974 = vmatpush1.bf16.msra.mxu0 %v756
    %975 = vmatprep.subr.bf16.mxu0 %v761
    %976 = vmatpush1.bf16.msra.mxu0 %v760
    %977 = vmatprep.subr.bf16.mxu0 %v765
    %978 = vmatpush1.bf16.msra.mxu0 %v764
    %979 = vmatprep.subr.bf16.mxu0 %v769
    %980 = vmatpush1.bf16.msra.mxu0 %v768
    %981 = vmatprep.subr.bf16.mxu0 %v773
    %982 = vmatpush1.bf16.msra.mxu0 %v772
    %983 = vmatprep.subr.bf16.mxu0 %v777
    %984 = vmatpush1.bf16.msra.mxu0 %v776
    %985 = vmatprep.subr.bf16.mxu0 %v781
    %986 = vmatpush1.bf16.msra.mxu0 %v780
    %987 = vmatprep.subr.bf16.mxu0 %v785
    %988 = vmatpush1.bf16.msra.mxu0 %v784
    %989 = vmatprep.mubr.bf16.mxu0 %v109
    %990 = vmatmul.mubr.bf16.gmra.mrb[0].mxu0 %v108
    %v991 = vpop.f32.mrb[0].mxu0
    %v992 = vadd.f32 %v951, %v991
    %v993 = vpop.f32.mrb[0].mxu0
    %v994 = vadd.f32 %v953, %v993
    %v995 = vpop.f32.mrb[0].mxu0
    %v996 = vpop.f32.mrb[0].mxu0
    %997 = vdwg.mxu0
    %998 = vmatprep.subr.bf16.mxu0 %v663
    %999 = vmatpush1.bf16.msra.mxu0 %v662
    %1000 = vmatprep.subr.bf16.mxu0 %v667
    %1001 = vmatpush1.bf16.msra.mxu0 %v666
    %1002 = vmatprep.subr.bf16.mxu0 %v671
    %1003 = vmatpush1.bf16.msra.mxu0 %v670
    %1004 = vmatprep.subr.bf16.mxu0 %v675
    %1005 = vmatpush1.bf16.msra.mxu0 %v674
    %1006 = vmatprep.subr.bf16.mxu0 %v679
    %1007 = vmatpush1.bf16.msra.mxu0 %v678
    %1008 = vmatprep.subr.bf16.mxu0 %v683
    %1009 = vmatpush1.bf16.msra.mxu0 %v682
    %1010 = vmatprep.subr.bf16.mxu0 %v687
    %1011 = vmatpush1.bf16.msra.mxu0 %v686
    %1012 = vmatprep.subr.bf16.mxu0 %v691
    %1013 = vmatpush1.bf16.msra.mxu0 %v690
    %1014 = vmatprep.subr.bf16.mxu0 %v695
    %1015 = vmatpush1.bf16.msra.mxu0 %v694
    %1016 = vmatprep.subr.bf16.mxu0 %v699
    %1017 = vmatpush1.bf16.msra.mxu0 %v698
    %1018 = vmatprep.subr.bf16.mxu0 %v703
    %1019 = vmatpush1.bf16.msra.mxu0 %v702
    %1020 = vmatprep.subr.bf16.mxu0 %v707
    %1021 = vmatpush1.bf16.msra.mxu0 %v706
    %1022 = vmatprep.subr.bf16.mxu0 %v711
    %1023 = vmatpush1.bf16.msra.mxu0 %v710
    %1024 = vmatprep.subr.bf16.mxu0 %v715
    %1025 = vmatpush1.bf16.msra.mxu0 %v714
    %1026 = vmatprep.subr.bf16.mxu0 %v719
    %1027 = vmatpush1.bf16.msra.mxu0 %v718
    %1028 = vmatprep.subr.bf16.mxu0 %v723
    %1029 = vmatpush1.bf16.msra.mxu0 %v722
    %1030 = vmatprep.mubr.bf16.mxu0 %v107
    %1031 = vmatmul.mubr.bf16.gmra.mrb[0].mxu0 %v106
    %v1032 = vpop.f32.mrb[0].mxu0
    %v1033 = vadd.f32 %v271, %v1032
    %v1034 = vpop.f32.mrb[0].mxu0
    %v1035 = vadd.f32 %v275, %v1034
    %v1036 = vpop.f32.mrb[0].mxu0
    %v1037 = vpop.f32.mrb[0].mxu0
    %1038 = vdwg.mxu0
    %1039 = vmatprep.subr.bf16.mxu0 %v727
    %1040 = vmatpush1.bf16.msra.mxu0 %v726
    %1041 = vmatprep.subr.bf16.mxu0 %v731
    %1042 = vmatpush1.bf16.msra.mxu0 %v730
    %1043 = vmatprep.subr.bf16.mxu0 %v735
    %1044 = vmatpush1.bf16.msra.mxu0 %v734
    %1045 = vmatprep.subr.bf16.mxu0 %v739
    %1046 = vmatpush1.bf16.msra.mxu0 %v738
    %1047 = vmatprep.subr.bf16.mxu0 %v743
    %1048 = vmatpush1.bf16.msra.mxu0 %v742
    %1049 = vmatprep.subr.bf16.mxu0 %v747
    %1050 = vmatpush1.bf16.msra.mxu0 %v746
    %1051 = vmatprep.subr.bf16.mxu0 %v751
    %1052 = vmatpush1.bf16.msra.mxu0 %v750
    %1053 = vmatprep.subr.bf16.mxu0 %v755
    %1054 = vmatpush1.bf16.msra.mxu0 %v754
    %1055 = vmatprep.subr.bf16.mxu0 %v759
    %1056 = vmatpush1.bf16.msra.mxu0 %v758
    %1057 = vmatprep.subr.bf16.mxu0 %v763
    %1058 = vmatpush1.bf16.msra.mxu0 %v762
    %1059 = vmatprep.subr.bf16.mxu0 %v767
    %1060 = vmatpush1.bf16.msra.mxu0 %v766
    %1061 = vmatprep.subr.bf16.mxu0 %v771
    %1062 = vmatpush1.bf16.msra.mxu0 %v770
    %1063 = vmatprep.subr.bf16.mxu0 %v775
    %1064 = vmatpush1.bf16.msra.mxu0 %v774
    %1065 = vmatprep.subr.bf16.mxu0 %v779
    %1066 = vmatpush1.bf16.msra.mxu0 %v778
    %1067 = vmatprep.subr.bf16.mxu0 %v783
    %1068 = vmatpush1.bf16.msra.mxu0 %v782
    %1069 = vmatprep.subr.bf16.mxu0 %v787
    %1070 = vmatpush1.bf16.msra.mxu0 %v786
    %1071 = vmatprep.mubr.bf16.mxu0 %v109
    %1072 = vmatmul.mubr.bf16.gmra.mrb[0].mxu0 %v108
    %v1073 = vpop.f32.mrb[0].mxu0
    %v1074 = vadd.f32 %v1033, %v1073
    %v1075 = vpop.f32.mrb[0].mxu0
    %v1076 = vadd.f32 %v1035, %v1075
    %v1077 = vpop.f32.mrb[0].mxu0
    %v1078 = vpop.f32.mrb[0].mxu0
    %1079 = vdwg.mxu0
    %vm1080 = vcmp.ge.f32.partialorder %v992, 0.0
    %vm1081 = vcmp.ge.f32.partialorder %v994, 0.0
    %vm1082 = vcmp.ge.f32.partialorder %v1074, 0.0
    %vm1083 = vcmp.ge.f32.partialorder %v1076, 0.0
    %v1084 = vmul.f32 %v992, 0.2
    %v1085 = vmul.f32 %v994, 0.2
    %v1086 = vmul.f32 %v1074, 0.2
    %v1087 = vmul.f32 %v1076, 0.2
    %v1088 = vsel %vm1080, %v992, %v1084
    %v1089 = vsel %vm1081, %v994, %v1085
    %v1090 = vsel %vm1082, %v1074, %v1086
    %v1091 = vsel %vm1083, %v1076, %v1087
    %v1092 = vmul.f32 %v1088, 1.4142135
    %v1093 = vmul.f32 %v1089, 1.4142135
    %v1094 = vmul.f32 %v1090, 1.4142135
    %v1095 = vmul.f32 %v1091, 1.4142135
    %v1096 = vpack.c.bf16 %v1092, %v1092
    %v1097 = vpack.c.bf16 %v1093, %v1093
    %v1098 = vpack.c.bf16 %v1094, %v1094
    %v1099 = vpack.c.bf16 %v1095, %v1095
    %s1100 = scalar_lea.vmem [#allocation5], 1024
    %v1101 = vld [vmem:[%s1100] sm:$0xff]
    %v1102 = vld [vmem:[%s1100 + $0x8] sm:$0xff]
    %v1103 = vld [vmem:[%s1100 + $0x10] sm:$0xff]
    %v1104 = vld [vmem:[%s1100 + $0x18] sm:$0xff]
    %v1105 = vld [vmem:[%s1100 + $0x20] sm:$0xff]
    %v1106 = vld [vmem:[%s1100 + $0x28] sm:$0xff]
    %v1107 = vld [vmem:[%s1100 + $0x30] sm:$0xff]
    %v1108 = vld [vmem:[%s1100 + $0x38] sm:$0xff]
    %v1109 = vld [vmem:[%s1100 + $0x40] sm:$0xff]
    %v1110 = vld [vmem:[%s1100 + $0x48] sm:$0xff]
    %v1111 = vld [vmem:[%s1100 + $0x50] sm:$0xff]
    %v1112 = vld [vmem:[%s1100 + $0x58] sm:$0xff]
    %v1113 = vld [vmem:[%s1100 + $0x60] sm:$0xff]
    %v1114 = vld [vmem:[%s1100 + $0x68] sm:$0xff]
    %v1115 = vld [vmem:[%s1100 + $0x70] sm:$0xff]
    %v1116 = vld [vmem:[%s1100 + $0x78] sm:$0xff]
    %v1117 = vld [vmem:[%s1100 + $0x80] sm:$0xff]
    %v1118 = vld [vmem:[%s1100 + $0x88] sm:$0xff]
    %v1119 = vld [vmem:[%s1100 + $0x90] sm:$0xff]
    %v1120 = vld [vmem:[%s1100 + $0x98] sm:$0xff]
    %v1121 = vld [vmem:[%s1100 + $0xa0] sm:$0xff]
    %v1122 = vld [vmem:[%s1100 + $0xa8] sm:$0xff]
    %v1123 = vld [vmem:[%s1100 + $0xb0] sm:$0xff]
    %v1124 = vld [vmem:[%s1100 + $0xb8] sm:$0xff]
    %v1125 = vld [vmem:[%s1100 + $0xc0] sm:$0xff]
    %v1126 = vld [vmem:[%s1100 + $0xc8] sm:$0xff]
    %v1127 = vld [vmem:[%s1100 + $0xd0] sm:$0xff]
    %v1128 = vld [vmem:[%s1100 + $0xd8] sm:$0xff]
    %v1129 = vld [vmem:[%s1100 + $0xe0] sm:$0xff]
    %v1130 = vld [vmem:[%s1100 + $0xe8] sm:$0xff]
    %v1131 = vld [vmem:[%s1100 + $0xf0] sm:$0xff]
    %v1132 = vld [vmem:[%s1100 + $0xf8] sm:$0xff]
    %v1133 = vld [vmem:[%s1100 + $0x100] sm:$0xff]
    %v1134 = vld [vmem:[%s1100 + $0x108] sm:$0xff]
    %v1135 = vld [vmem:[%s1100 + $0x110] sm:$0xff]
    %v1136 = vld [vmem:[%s1100 + $0x118] sm:$0xff]
    %v1137 = vld [vmem:[%s1100 + $0x120] sm:$0xff]
    %v1138 = vld [vmem:[%s1100 + $0x128] sm:$0xff]
    %v1139 = vld [vmem:[%s1100 + $0x130] sm:$0xff]
    %v1140 = vld [vmem:[%s1100 + $0x138] sm:$0xff]
    %v1141 = vld [vmem:[%s1100 + $0x140] sm:$0xff]
    %v1142 = vld [vmem:[%s1100 + $0x148] sm:$0xff]
    %v1143 = vld [vmem:[%s1100 + $0x150] sm:$0xff]
    %v1144 = vld [vmem:[%s1100 + $0x158] sm:$0xff]
    %v1145 = vld [vmem:[%s1100 + $0x160] sm:$0xff]
    %v1146 = vld [vmem:[%s1100 + $0x168] sm:$0xff]
    %v1147 = vld [vmem:[%s1100 + $0x170] sm:$0xff]
    %v1148 = vld [vmem:[%s1100 + $0x178] sm:$0xff]
    %v1149 = vld [vmem:[%s1100 + $0x180] sm:$0xff]
    %v1150 = vld [vmem:[%s1100 + $0x188] sm:$0xff]
    %v1151 = vld [vmem:[%s1100 + $0x190] sm:$0xff]
    %v1152 = vld [vmem:[%s1100 + $0x198] sm:$0xff]
    %v1153 = vld [vmem:[%s1100 + $0x1a0] sm:$0xff]
    %v1154 = vld [vmem:[%s1100 + $0x1a8] sm:$0xff]
    %v1155 = vld [vmem:[%s1100 + $0x1b0] sm:$0xff]
    %v1156 = vld [vmem:[%s1100 + $0x1b8] sm:$0xff]
    %v1157 = vld [vmem:[%s1100 + $0x1c0] sm:$0xff]
    %v1158 = vld [vmem:[%s1100 + $0x1c8] sm:$0xff]
    %v1159 = vld [vmem:[%s1100 + $0x1d0] sm:$0xff]
    %v1160 = vld [vmem:[%s1100 + $0x1d8] sm:$0xff]
    %v1161 = vld [vmem:[%s1100 + $0x1e0] sm:$0xff]
    %v1162 = vld [vmem:[%s1100 + $0x1e8] sm:$0xff]
    %v1163 = vld [vmem:[%s1100 + $0x1f0] sm:$0xff]
    %v1164 = vld [vmem:[%s1100 + $0x1f8] sm:$0xff]
    %v1165 = vld [vmem:[%s1100 + $0x200] sm:$0xff]
    %v1166 = vld [vmem:[%s1100 + $0x208] sm:$0xff]
    %v1167 = vld [vmem:[%s1100 + $0x210] sm:$0xff]
    %v1168 = vld [vmem:[%s1100 + $0x218] sm:$0xff]
    %v1169 = vld [vmem:[%s1100 + $0x220] sm:$0xff]
    %v1170 = vld [vmem:[%s1100 + $0x228] sm:$0xff]
    %v1171 = vld [vmem:[%s1100 + $0x230] sm:$0xff]
    %v1172 = vld [vmem:[%s1100 + $0x238] sm:$0xff]
    %v1173 = vld [vmem:[%s1100 + $0x240] sm:$0xff]
    %v1174 = vld [vmem:[%s1100 + $0x248] sm:$0xff]
    %v1175 = vld [vmem:[%s1100 + $0x250] sm:$0xff]
    %v1176 = vld [vmem:[%s1100 + $0x258] sm:$0xff]
    %v1177 = vld [vmem:[%s1100 + $0x260] sm:$0xff]
    %v1178 = vld [vmem:[%s1100 + $0x268] sm:$0xff]
    %v1179 = vld [vmem:[%s1100 + $0x270] sm:$0xff]
    %v1180 = vld [vmem:[%s1100 + $0x278] sm:$0xff]
    %v1181 = vld [vmem:[%s1100 + $0x280] sm:$0xff]
    %v1182 = vld [vmem:[%s1100 + $0x288] sm:$0xff]
    %v1183 = vld [vmem:[%s1100 + $0x290] sm:$0xff]
    %v1184 = vld [vmem:[%s1100 + $0x298] sm:$0xff]
    %v1185 = vld [vmem:[%s1100 + $0x2a0] sm:$0xff]
    %v1186 = vld [vmem:[%s1100 + $0x2a8] sm:$0xff]
    %v1187 = vld [vmem:[%s1100 + $0x2b0] sm:$0xff]
    %v1188 = vld [vmem:[%s1100 + $0x2b8] sm:$0xff]
    %v1189 = vld [vmem:[%s1100 + $0x2c0] sm:$0xff]
    %v1190 = vld [vmem:[%s1100 + $0x2c8] sm:$0xff]
    %v1191 = vld [vmem:[%s1100 + $0x2d0] sm:$0xff]
    %v1192 = vld [vmem:[%s1100 + $0x2d8] sm:$0xff]
    %v1193 = vld [vmem:[%s1100 + $0x2e0] sm:$0xff]
    %v1194 = vld [vmem:[%s1100 + $0x2e8] sm:$0xff]
    %v1195 = vld [vmem:[%s1100 + $0x2f0] sm:$0xff]
    %v1196 = vld [vmem:[%s1100 + $0x2f8] sm:$0xff]
    %v1197 = vld [vmem:[%s1100 + $0x300] sm:$0xff]
    %v1198 = vld [vmem:[%s1100 + $0x308] sm:$0xff]
    %v1199 = vld [vmem:[%s1100 + $0x310] sm:$0xff]
    %v1200 = vld [vmem:[%s1100 + $0x318] sm:$0xff]
    %v1201 = vld [vmem:[%s1100 + $0x320] sm:$0xff]
    %v1202 = vld [vmem:[%s1100 + $0x328] sm:$0xff]
    %v1203 = vld [vmem:[%s1100 + $0x330] sm:$0xff]
    %v1204 = vld [vmem:[%s1100 + $0x338] sm:$0xff]
    %v1205 = vld [vmem:[%s1100 + $0x340] sm:$0xff]
    %v1206 = vld [vmem:[%s1100 + $0x348] sm:$0xff]
    %v1207 = vld [vmem:[%s1100 + $0x350] sm:$0xff]
    %v1208 = vld [vmem:[%s1100 + $0x358] sm:$0xff]
    %v1209 = vld [vmem:[%s1100 + $0x360] sm:$0xff]
    %v1210 = vld [vmem:[%s1100 + $0x368] sm:$0xff]
    %v1211 = vld [vmem:[%s1100 + $0x370] sm:$0xff]
    %v1212 = vld [vmem:[%s1100 + $0x378] sm:$0xff]
    %v1213 = vld [vmem:[%s1100 + $0x380] sm:$0xff]
    %v1214 = vld [vmem:[%s1100 + $0x388] sm:$0xff]
    %v1215 = vld [vmem:[%s1100 + $0x390] sm:$0xff]
    %v1216 = vld [vmem:[%s1100 + $0x398] sm:$0xff]
    %v1217 = vld [vmem:[%s1100 + $0x3a0] sm:$0xff]
    %v1218 = vld [vmem:[%s1100 + $0x3a8] sm:$0xff]
    %v1219 = vld [vmem:[%s1100 + $0x3b0] sm:$0xff]
    %v1220 = vld [vmem:[%s1100 + $0x3b8] sm:$0xff]
    %v1221 = vld [vmem:[%s1100 + $0x3c0] sm:$0xff]
    %v1222 = vld [vmem:[%s1100 + $0x3c8] sm:$0xff]
    %v1223 = vld [vmem:[%s1100 + $0x3d0] sm:$0xff]
    %v1224 = vld [vmem:[%s1100 + $0x3d8] sm:$0xff]
    %v1225 = vld [vmem:[%s1100 + $0x3e0] sm:$0xff]
    %v1226 = vld [vmem:[%s1100 + $0x3e8] sm:$0xff]
    %v1227 = vld [vmem:[%s1100 + $0x3f0] sm:$0xff]
    %v1228 = vld [vmem:[%s1100 + $0x3f8] sm:$0xff]
    %v1229 = vlaneseq
    %v1230 = vshrl.u32 %v1229, 7
    %v1231 = vsub.s32 1, %v1230
    %v1232 = vrot.slane %v104, %v1231
    %v1233 = vlaneseq
    %v1234 = vshrl.u32 %v1233, 7
    %v1235 = vsub.s32 5, %v1234
    %v1236 = vrot.slane %v104, %v1235
    %v1237 = vlaneseq
    %v1238 = vshrl.u32 %v1237, 7
    %v1239 = vsub.s32 1, %v1238
    %v1240 = vrot.slane %v105, %v1239
    %v1241 = vlaneseq
    %v1242 = vshrl.u32 %v1241, 7
    %v1243 = vsub.s32 5, %v1242
    %v1244 = vrot.slane %v105, %v1243
    %v1249 = vlaneseq
    %v1250 = vshrl.u32 %v1249, 7
    %v1251 = vsub.s32 1, %v1250
    %v1252 = vrot.slane %v1232, %v1251
    %v1253 = vlaneseq
    %v1254 = vshrl.u32 %v1253, 7
    %v1255 = vsub.s32 1, %v1254
    %v1256 = vrot.slane %v1236, %v1255
    %v1257 = vlaneseq
    %v1258 = vshrl.u32 %v1257, 7
    %v1259 = vsub.s32 1, %v1258
    %v1260 = vrot.slane %v1240, %v1259
    %v1261 = vlaneseq
    %v1262 = vshrl.u32 %v1261, 7
    %v1263 = vsub.s32 1, %v1262
    %v1264 = vrot.slane %v1244, %v1263
    %v1393 = vunpack.c.l.b16 %v1101
    %v1394 = vunpack.c.h.b16 %v1101
    %v1395 = vunpack.c.l.b16 %v1102
    %v1396 = vunpack.c.h.b16 %v1102
    %v1397 = vunpack.c.l.b16 %v1103
    %v1398 = vunpack.c.h.b16 %v1103
    %v1399 = vunpack.c.l.b16 %v1104
    %v1400 = vunpack.c.h.b16 %v1104
    %v1401 = vunpack.c.l.b16 %v1105
    %v1402 = vunpack.c.h.b16 %v1105
    %v1403 = vunpack.c.l.b16 %v1106
    %v1404 = vunpack.c.h.b16 %v1106
    %v1405 = vunpack.c.l.b16 %v1107
    %v1406 = vunpack.c.h.b16 %v1107
    %v1407 = vunpack.c.l.b16 %v1108
    %v1408 = vunpack.c.h.b16 %v1108
    %v1409 = vunpack.c.l.b16 %v1109
    %v1410 = vunpack.c.h.b16 %v1109
    %v1411 = vunpack.c.l.b16 %v1110
    %v1412 = vunpack.c.h.b16 %v1110
    %v1413 = vunpack.c.l.b16 %v1111
    %v1414 = vunpack.c.h.b16 %v1111
    %v1415 = vunpack.c.l.b16 %v1112
    %v1416 = vunpack.c.h.b16 %v1112
    %v1417 = vunpack.c.l.b16 %v1113
    %v1418 = vunpack.c.h.b16 %v1113
    %v1419 = vunpack.c.l.b16 %v1114
    %v1420 = vunpack.c.h.b16 %v1114
    %v1421 = vunpack.c.l.b16 %v1115
    %v1422 = vunpack.c.h.b16 %v1115
    %v1423 = vunpack.c.l.b16 %v1116
    %v1424 = vunpack.c.h.b16 %v1116
    %v1425 = vunpack.c.l.b16 %v1117
    %v1426 = vunpack.c.h.b16 %v1117
    %v1427 = vunpack.c.l.b16 %v1118
    %v1428 = vunpack.c.h.b16 %v1118
    %v1429 = vunpack.c.l.b16 %v1119
    %v1430 = vunpack.c.h.b16 %v1119
    %v1431 = vunpack.c.l.b16 %v1120
    %v1432 = vunpack.c.h.b16 %v1120
    %v1433 = vunpack.c.l.b16 %v1121
    %v1434 = vunpack.c.h.b16 %v1121
    %v1435 = vunpack.c.l.b16 %v1122
    %v1436 = vunpack.c.h.b16 %v1122
    %v1437 = vunpack.c.l.b16 %v1123
    %v1438 = vunpack.c.h.b16 %v1123
    %v1439 = vunpack.c.l.b16 %v1124
    %v1440 = vunpack.c.h.b16 %v1124
    %v1441 = vunpack.c.l.b16 %v1125
    %v1442 = vunpack.c.h.b16 %v1125
    %v1443 = vunpack.c.l.b16 %v1126
    %v1444 = vunpack.c.h.b16 %v1126
    %v1445 = vunpack.c.l.b16 %v1127
    %v1446 = vunpack.c.h.b16 %v1127
    %v1447 = vunpack.c.l.b16 %v1128
    %v1448 = vunpack.c.h.b16 %v1128
    %v1449 = vunpack.c.l.b16 %v1129
    %v1450 = vunpack.c.h.b16 %v1129
    %v1451 = vunpack.c.l.b16 %v1130
    %v1452 = vunpack.c.h.b16 %v1130
    %v1453 = vunpack.c.l.b16 %v1131
    %v1454 = vunpack.c.h.b16 %v1131
    %v1455 = vunpack.c.l.b16 %v1132
    %v1456 = vunpack.c.h.b16 %v1132
    %v1457 = vunpack.c.l.b16 %v1133
    %v1458 = vunpack.c.h.b16 %v1133
    %v1459 = vunpack.c.l.b16 %v1134
    %v1460 = vunpack.c.h.b16 %v1134
    %v1461 = vunpack.c.l.b16 %v1135
    %v1462 = vunpack.c.h.b16 %v1135
    %v1463 = vunpack.c.l.b16 %v1136
    %v1464 = vunpack.c.h.b16 %v1136
    %v1465 = vunpack.c.l.b16 %v1137
    %v1466 = vunpack.c.h.b16 %v1137
    %v1467 = vunpack.c.l.b16 %v1138
    %v1468 = vunpack.c.h.b16 %v1138
    %v1469 = vunpack.c.l.b16 %v1139
    %v1470 = vunpack.c.h.b16 %v1139
    %v1471 = vunpack.c.l.b16 %v1140
    %v1472 = vunpack.c.h.b16 %v1140
    %v1473 = vunpack.c.l.b16 %v1141
    %v1474 = vunpack.c.h.b16 %v1141
    %v1475 = vunpack.c.l.b16 %v1142
    %v1476 = vunpack.c.h.b16 %v1142
    %v1477 = vunpack.c.l.b16 %v1143
    %v1478 = vunpack.c.h.b16 %v1143
    %v1479 = vunpack.c.l.b16 %v1144
    %v1480 = vunpack.c.h.b16 %v1144
    %v1481 = vunpack.c.l.b16 %v1145
    %v1482 = vunpack.c.h.b16 %v1145
    %v1483 = vunpack.c.l.b16 %v1146
    %v1484 = vunpack.c.h.b16 %v1146
    %v1485 = vunpack.c.l.b16 %v1147
    %v1486 = vunpack.c.h.b16 %v1147
    %v1487 = vunpack.c.l.b16 %v1148
    %v1488 = vunpack.c.h.b16 %v1148
    %v1489 = vunpack.c.l.b16 %v1149
    %v1490 = vunpack.c.h.b16 %v1149
    %v1491 = vunpack.c.l.b16 %v1150
    %v1492 = vunpack.c.h.b16 %v1150
    %v1493 = vunpack.c.l.b16 %v1151
    %v1494 = vunpack.c.h.b16 %v1151
    %v1495 = vunpack.c.l.b16 %v1152
    %v1496 = vunpack.c.h.b16 %v1152
    %v1497 = vunpack.c.l.b16 %v1153
    %v1498 = vunpack.c.h.b16 %v1153
    %v1499 = vunpack.c.l.b16 %v1154
    %v1500 = vunpack.c.h.b16 %v1154
    %v1501 = vunpack.c.l.b16 %v1155
    %v1502 = vunpack.c.h.b16 %v1155
    %v1503 = vunpack.c.l.b16 %v1156
    %v1504 = vunpack.c.h.b16 %v1156
    %v1505 = vunpack.c.l.b16 %v1157
    %v1506 = vunpack.c.h.b16 %v1157
    %v1507 = vunpack.c.l.b16 %v1158
    %v1508 = vunpack.c.h.b16 %v1158
    %v1509 = vunpack.c.l.b16 %v1159
    %v1510 = vunpack.c.h.b16 %v1159
    %v1511 = vunpack.c.l.b16 %v1160
    %v1512 = vunpack.c.h.b16 %v1160
    %v1513 = vunpack.c.l.b16 %v1161
    %v1514 = vunpack.c.h.b16 %v1161
    %v1515 = vunpack.c.l.b16 %v1162
    %v1516 = vunpack.c.h.b16 %v1162
    %v1517 = vunpack.c.l.b16 %v1163
    %v1518 = vunpack.c.h.b16 %v1163
    %v1519 = vunpack.c.l.b16 %v1164
    %v1520 = vunpack.c.h.b16 %v1164
    %v1521 = vunpack.c.l.b16 %v1165
    %v1522 = vunpack.c.h.b16 %v1165
    %v1523 = vunpack.c.l.b16 %v1166
    %v1524 = vunpack.c.h.b16 %v1166
    %v1525 = vunpack.c.l.b16 %v1167
    %v1526 = vunpack.c.h.b16 %v1167
    %v1527 = vunpack.c.l.b16 %v1168
    %v1528 = vunpack.c.h.b16 %v1168
    %v1529 = vunpack.c.l.b16 %v1169
    %v1530 = vunpack.c.h.b16 %v1169
    %v1531 = vunpack.c.l.b16 %v1170
    %v1532 = vunpack.c.h.b16 %v1170
    %v1533 = vunpack.c.l.b16 %v1171
    %v1534 = vunpack.c.h.b16 %v1171
    %v1535 = vunpack.c.l.b16 %v1172
    %v1536 = vunpack.c.h.b16 %v1172
    %v1537 = vunpack.c.l.b16 %v1173
    %v1538 = vunpack.c.h.b16 %v1173
    %v1539 = vunpack.c.l.b16 %v1174
    %v1540 = vunpack.c.h.b16 %v1174
    %v1541 = vunpack.c.l.b16 %v1175
    %v1542 = vunpack.c.h.b16 %v1175
    %v1543 = vunpack.c.l.b16 %v1176
    %v1544 = vunpack.c.h.b16 %v1176
    %v1545 = vunpack.c.l.b16 %v1177
    %v1546 = vunpack.c.h.b16 %v1177
    %v1547 = vunpack.c.l.b16 %v1178
    %v1548 = vunpack.c.h.b16 %v1178
    %v1549 = vunpack.c.l.b16 %v1179
    %v1550 = vunpack.c.h.b16 %v1179
    %v1551 = vunpack.c.l.b16 %v1180
    %v1552 = vunpack.c.h.b16 %v1180
    %v1553 = vunpack.c.l.b16 %v1181
    %v1554 = vunpack.c.h.b16 %v1181
    %v1555 = vunpack.c.l.b16 %v1182
    %v1556 = vunpack.c.h.b16 %v1182
    %v1557 = vunpack.c.l.b16 %v1183
    %v1558 = vunpack.c.h.b16 %v1183
    %v1559 = vunpack.c.l.b16 %v1184
    %v1560 = vunpack.c.h.b16 %v1184
    %v1561 = vunpack.c.l.b16 %v1185
    %v1562 = vunpack.c.h.b16 %v1185
    %v1563 = vunpack.c.l.b16 %v1186
    %v1564 = vunpack.c.h.b16 %v1186
    %v1565 = vunpack.c.l.b16 %v1187
    %v1566 = vunpack.c.h.b16 %v1187
    %v1567 = vunpack.c.l.b16 %v1188
    %v1568 = vunpack.c.h.b16 %v1188
    %v1569 = vunpack.c.l.b16 %v1189
    %v1570 = vunpack.c.h.b16 %v1189
    %v1571 = vunpack.c.l.b16 %v1190
    %v1572 = vunpack.c.h.b16 %v1190
    %v1573 = vunpack.c.l.b16 %v1191
    %v1574 = vunpack.c.h.b16 %v1191
    %v1575 = vunpack.c.l.b16 %v1192
    %v1576 = vunpack.c.h.b16 %v1192
    %v1577 = vunpack.c.l.b16 %v1193
    %v1578 = vunpack.c.h.b16 %v1193
    %v1579 = vunpack.c.l.b16 %v1194
    %v1580 = vunpack.c.h.b16 %v1194
    %v1581 = vunpack.c.l.b16 %v1195
    %v1582 = vunpack.c.h.b16 %v1195
    %v1583 = vunpack.c.l.b16 %v1196
    %v1584 = vunpack.c.h.b16 %v1196
    %v1585 = vunpack.c.l.b16 %v1197
    %v1586 = vunpack.c.h.b16 %v1197
    %v1587 = vunpack.c.l.b16 %v1198
    %v1588 = vunpack.c.h.b16 %v1198
    %v1589 = vunpack.c.l.b16 %v1199
    %v1590 = vunpack.c.h.b16 %v1199
    %v1591 = vunpack.c.l.b16 %v1200
    %v1592 = vunpack.c.h.b16 %v1200
    %v1593 = vunpack.c.l.b16 %v1201
    %v1594 = vunpack.c.h.b16 %v1201
    %v1595 = vunpack.c.l.b16 %v1202
    %v1596 = vunpack.c.h.b16 %v1202
    %v1597 = vunpack.c.l.b16 %v1203
    %v1598 = vunpack.c.h.b16 %v1203
    %v1599 = vunpack.c.l.b16 %v1204
    %v1600 = vunpack.c.h.b16 %v1204
    %v1601 = vunpack.c.l.b16 %v1205
    %v1602 = vunpack.c.h.b16 %v1205
    %v1603 = vunpack.c.l.b16 %v1206
    %v1604 = vunpack.c.h.b16 %v1206
    %v1605 = vunpack.c.l.b16 %v1207
    %v1606 = vunpack.c.h.b16 %v1207
    %v1607 = vunpack.c.l.b16 %v1208
    %v1608 = vunpack.c.h.b16 %v1208
    %v1609 = vunpack.c.l.b16 %v1209
    %v1610 = vunpack.c.h.b16 %v1209
    %v1611 = vunpack.c.l.b16 %v1210
    %v1612 = vunpack.c.h.b16 %v1210
    %v1613 = vunpack.c.l.b16 %v1211
    %v1614 = vunpack.c.h.b16 %v1211
    %v1615 = vunpack.c.l.b16 %v1212
    %v1616 = vunpack.c.h.b16 %v1212
    %v1617 = vunpack.c.l.b16 %v1213
    %v1618 = vunpack.c.h.b16 %v1213
    %v1619 = vunpack.c.l.b16 %v1214
    %v1620 = vunpack.c.h.b16 %v1214
    %v1621 = vunpack.c.l.b16 %v1215
    %v1622 = vunpack.c.h.b16 %v1215
    %v1623 = vunpack.c.l.b16 %v1216
    %v1624 = vunpack.c.h.b16 %v1216
    %v1625 = vunpack.c.l.b16 %v1217
    %v1626 = vunpack.c.h.b16 %v1217
    %v1627 = vunpack.c.l.b16 %v1218
    %v1628 = vunpack.c.h.b16 %v1218
    %v1629 = vunpack.c.l.b16 %v1219
    %v1630 = vunpack.c.h.b16 %v1219
    %v1631 = vunpack.c.l.b16 %v1220
    %v1632 = vunpack.c.h.b16 %v1220
    %v1633 = vunpack.c.l.b16 %v1221
    %v1634 = vunpack.c.h.b16 %v1221
    %v1635 = vunpack.c.l.b16 %v1222
    %v1636 = vunpack.c.h.b16 %v1222
    %v1637 = vunpack.c.l.b16 %v1223
    %v1638 = vunpack.c.h.b16 %v1223
    %v1639 = vunpack.c.l.b16 %v1224
    %v1640 = vunpack.c.h.b16 %v1224
    %v1641 = vunpack.c.l.b16 %v1225
    %v1642 = vunpack.c.h.b16 %v1225
    %v1643 = vunpack.c.l.b16 %v1226
    %v1644 = vunpack.c.h.b16 %v1226
    %v1645 = vunpack.c.l.b16 %v1227
    %v1646 = vunpack.c.h.b16 %v1227
    %v1647 = vunpack.c.l.b16 %v1228
    %v1648 = vunpack.c.h.b16 %v1228
    %v1649 = vpack.c.b16 %v1397, %v1393
    %v1650 = vpack.c.b16 %v1398, %v1394
    %v1651 = vpack.c.b16 %v1399, %v1395
    %v1652 = vpack.c.b16 %v1400, %v1396
    %v1653 = vpack.c.b16 %v1405, %v1401
    %v1654 = vpack.c.b16 %v1406, %v1402
    %v1655 = vpack.c.b16 %v1407, %v1403
    %v1656 = vpack.c.b16 %v1408, %v1404
    %v1657 = vpack.c.b16 %v1413, %v1409
    %v1658 = vpack.c.b16 %v1414, %v1410
    %v1659 = vpack.c.b16 %v1415, %v1411
    %v1660 = vpack.c.b16 %v1416, %v1412
    %v1661 = vpack.c.b16 %v1421, %v1417
    %v1662 = vpack.c.b16 %v1422, %v1418
    %v1663 = vpack.c.b16 %v1423, %v1419
    %v1664 = vpack.c.b16 %v1424, %v1420
    %v1665 = vpack.c.b16 %v1429, %v1425
    %v1666 = vpack.c.b16 %v1430, %v1426
    %v1667 = vpack.c.b16 %v1431, %v1427
    %v1668 = vpack.c.b16 %v1432, %v1428
    %v1669 = vpack.c.b16 %v1437, %v1433
    %v1670 = vpack.c.b16 %v1438, %v1434
    %v1671 = vpack.c.b16 %v1439, %v1435
    %v1672 = vpack.c.b16 %v1440, %v1436
    %v1673 = vpack.c.b16 %v1445, %v1441
    %v1674 = vpack.c.b16 %v1446, %v1442
    %v1675 = vpack.c.b16 %v1447, %v1443
    %v1676 = vpack.c.b16 %v1448, %v1444
    %v1677 = vpack.c.b16 %v1453, %v1449
    %v1678 = vpack.c.b16 %v1454, %v1450
    %v1679 = vpack.c.b16 %v1455, %v1451
    %v1680 = vpack.c.b16 %v1456, %v1452
    %v1681 = vpack.c.b16 %v1461, %v1457
    %v1682 = vpack.c.b16 %v1462, %v1458
    %v1683 = vpack.c.b16 %v1463, %v1459
    %v1684 = vpack.c.b16 %v1464, %v1460
    %v1685 = vpack.c.b16 %v1469, %v1465
    %v1686 = vpack.c.b16 %v1470, %v1466
    %v1687 = vpack.c.b16 %v1471, %v1467
    %v1688 = vpack.c.b16 %v1472, %v1468
    %v1689 = vpack.c.b16 %v1477, %v1473
    %v1690 = vpack.c.b16 %v1478, %v1474
    %v1691 = vpack.c.b16 %v1479, %v1475
    %v1692 = vpack.c.b16 %v1480, %v1476
    %v1693 = vpack.c.b16 %v1485, %v1481
    %v1694 = vpack.c.b16 %v1486, %v1482
    %v1695 = vpack.c.b16 %v1487, %v1483
    %v1696 = vpack.c.b16 %v1488, %v1484
    %v1697 = vpack.c.b16 %v1493, %v1489
    %v1698 = vpack.c.b16 %v1494, %v1490
    %v1699 = vpack.c.b16 %v1495, %v1491
    %v1700 = vpack.c.b16 %v1496, %v1492
    %v1701 = vpack.c.b16 %v1501, %v1497
    %v1702 = vpack.c.b16 %v1502, %v1498
    %v1703 = vpack.c.b16 %v1503, %v1499
    %v1704 = vpack.c.b16 %v1504, %v1500
    %v1705 = vpack.c.b16 %v1509, %v1505
    %v1706 = vpack.c.b16 %v1510, %v1506
    %v1707 = vpack.c.b16 %v1511, %v1507
    %v1708 = vpack.c.b16 %v1512, %v1508
    %v1709 = vpack.c.b16 %v1517, %v1513
    %v1710 = vpack.c.b16 %v1518, %v1514
    %v1711 = vpack.c.b16 %v1519, %v1515
    %v1712 = vpack.c.b16 %v1520, %v1516
    %v1713 = vpack.c.b16 %v1525, %v1521
    %v1714 = vpack.c.b16 %v1526, %v1522
    %v1715 = vpack.c.b16 %v1527, %v1523
    %v1716 = vpack.c.b16 %v1528, %v1524
    %v1717 = vpack.c.b16 %v1533, %v1529
    %v1718 = vpack.c.b16 %v1534, %v1530
    %v1719 = vpack.c.b16 %v1535, %v1531
    %v1720 = vpack.c.b16 %v1536, %v1532
    %v1721 = vpack.c.b16 %v1541, %v1537
    %v1722 = vpack.c.b16 %v1542, %v1538
    %v1723 = vpack.c.b16 %v1543, %v1539
    %v1724 = vpack.c.b16 %v1544, %v1540
    %v1725 = vpack.c.b16 %v1549, %v1545
    %v1726 = vpack.c.b16 %v1550, %v1546
    %v1727 = vpack.c.b16 %v1551, %v1547
    %v1728 = vpack.c.b16 %v1552, %v1548
    %v1729 = vpack.c.b16 %v1557, %v1553
    %v1730 = vpack.c.b16 %v1558, %v1554
    %v1731 = vpack.c.b16 %v1559, %v1555
    %v1732 = vpack.c.b16 %v1560, %v1556
    %v1733 = vpack.c.b16 %v1565, %v1561
    %v1734 = vpack.c.b16 %v1566, %v1562
    %v1735 = vpack.c.b16 %v1567, %v1563
    %v1736 = vpack.c.b16 %v1568, %v1564
    %v1737 = vpack.c.b16 %v1573, %v1569
    %v1738 = vpack.c.b16 %v1574, %v1570
    %v1739 = vpack.c.b16 %v1575, %v1571
    %v1740 = vpack.c.b16 %v1576, %v1572
    %v1741 = vpack.c.b16 %v1581, %v1577
    %v1742 = vpack.c.b16 %v1582, %v1578
    %v1743 = vpack.c.b16 %v1583, %v1579
    %v1744 = vpack.c.b16 %v1584, %v1580
    %v1745 = vpack.c.b16 %v1589, %v1585
    %v1746 = vpack.c.b16 %v1590, %v1586
    %v1747 = vpack.c.b16 %v1591, %v1587
    %v1748 = vpack.c.b16 %v1592, %v1588
    %v1749 = vpack.c.b16 %v1597, %v1593
    %v1750 = vpack.c.b16 %v1598, %v1594
    %v1751 = vpack.c.b16 %v1599, %v1595
    %v1752 = vpack.c.b16 %v1600, %v1596
    %v1753 = vpack.c.b16 %v1605, %v1601
    %v1754 = vpack.c.b16 %v1606, %v1602
    %v1755 = vpack.c.b16 %v1607, %v1603
    %v1756 = vpack.c.b16 %v1608, %v1604
    %v1757 = vpack.c.b16 %v1613, %v1609
    %v1758 = vpack.c.b16 %v1614, %v1610
    %v1759 = vpack.c.b16 %v1615, %v1611
    %v1760 = vpack.c.b16 %v1616, %v1612
    %v1761 = vpack.c.b16 %v1621, %v1617
    %v1762 = vpack.c.b16 %v1622, %v1618
    %v1763 = vpack.c.b16 %v1623, %v1619
    %v1764 = vpack.c.b16 %v1624, %v1620
    %v1765 = vpack.c.b16 %v1629, %v1625
    %v1766 = vpack.c.b16 %v1630, %v1626
    %v1767 = vpack.c.b16 %v1631, %v1627
    %v1768 = vpack.c.b16 %v1632, %v1628
    %v1769 = vpack.c.b16 %v1637, %v1633
    %v1770 = vpack.c.b16 %v1638, %v1634
    %v1771 = vpack.c.b16 %v1639, %v1635
    %v1772 = vpack.c.b16 %v1640, %v1636
    %v1773 = vpack.c.b16 %v1645, %v1641
    %v1774 = vpack.c.b16 %v1646, %v1642
    %v1775 = vpack.c.b16 %v1647, %v1643
    %v1776 = vpack.c.b16 %v1648, %v1644
    %1905 = vmatprep.subr.bf16.mxu0 %v1650
    %1906 = vmatpush1.bf16.msra.mxu0 %v1649
    %1907 = vmatprep.subr.bf16.mxu0 %v1654
    %1908 = vmatpush1.bf16.msra.mxu0 %v1653
    %1909 = vmatprep.subr.bf16.mxu0 %v1658
    %1910 = vmatpush1.bf16.msra.mxu0 %v1657
    %1911 = vmatprep.subr.bf16.mxu0 %v1662
    %1912 = vmatpush1.bf16.msra.mxu0 %v1661
    %1913 = vmatprep.subr.bf16.mxu0 %v1666
    %1914 = vmatpush1.bf16.msra.mxu0 %v1665
    %1915 = vmatprep.subr.bf16.mxu0 %v1670
    %1916 = vmatpush1.bf16.msra.mxu0 %v1669
    %1917 = vmatprep.subr.bf16.mxu0 %v1674
    %1918 = vmatpush1.bf16.msra.mxu0 %v1673
    %1919 = vmatprep.subr.bf16.mxu0 %v1678
    %1920 = vmatpush1.bf16.msra.mxu0 %v1677
    %1921 = vmatprep.subr.bf16.mxu0 %v1682
    %1922 = vmatpush1.bf16.msra.mxu0 %v1681
    %1923 = vmatprep.subr.bf16.mxu0 %v1686
    %1924 = vmatpush1.bf16.msra.mxu0 %v1685
    %1925 = vmatprep.subr.bf16.mxu0 %v1690
    %1926 = vmatpush1.bf16.msra.mxu0 %v1689
    %1927 = vmatprep.subr.bf16.mxu0 %v1694
    %1928 = vmatpush1.bf16.msra.mxu0 %v1693
    %1929 = vmatprep.subr.bf16.mxu0 %v1698
    %1930 = vmatpush1.bf16.msra.mxu0 %v1697
    %1931 = vmatprep.subr.bf16.mxu0 %v1702
    %1932 = vmatpush1.bf16.msra.mxu0 %v1701
    %1933 = vmatprep.subr.bf16.mxu0 %v1706
    %1934 = vmatpush1.bf16.msra.mxu0 %v1705
    %1935 = vmatprep.subr.bf16.mxu0 %v1710
    %1936 = vmatpush1.bf16.msra.mxu0 %v1709
    %1937 = vmatprep.mubr.bf16.mxu0 %v1097
    %1938 = vmatmul.mubr.bf16.gmra.mrb[0].mxu0 %v1096
    %v1939 = vpop.f32.mrb[0].mxu0
    %v1940 = vadd.f32 %v1252, %v1939
    %v1941 = vpop.f32.mrb[0].mxu0
    %v1942 = vadd.f32 %v1256, %v1941
    %v1943 = vpop.f32.mrb[0].mxu0
    %v1944 = vpop.f32.mrb[0].mxu0
    %1945 = vdwg.mxu0
    %1946 = vmatprep.subr.bf16.mxu0 %v1714
    %1947 = vmatpush1.bf16.msra.mxu0 %v1713
    %1948 = vmatprep.subr.bf16.mxu0 %v1718
    %1949 = vmatpush1.bf16.msra.mxu0 %v1717
    %1950 = vmatprep.subr.bf16.mxu0 %v1722
    %1951 = vmatpush1.bf16.msra.mxu0 %v1721
    %1952 = vmatprep.subr.bf16.mxu0 %v1726
    %1953 = vmatpush1.bf16.msra.mxu0 %v1725
    %1954 = vmatprep.subr.bf16.mxu0 %v1730
    %1955 = vmatpush1.bf16.msra.mxu0 %v1729
    %1956 = vmatprep.subr.bf16.mxu0 %v1734
    %1957 = vmatpush1.bf16.msra.mxu0 %v1733
    %1958 = vmatprep.subr.bf16.mxu0 %v1738
    %1959 = vmatpush1.bf16.msra.mxu0 %v1737
    %1960 = vmatprep.subr.bf16.mxu0 %v1742
    %1961 = vmatpush1.bf16.msra.mxu0 %v1741
    %1962 = vmatprep.subr.bf16.mxu0 %v1746
    %1963 = vmatpush1.bf16.msra.mxu0 %v1745
    %1964 = vmatprep.subr.bf16.mxu0 %v1750
    %1965 = vmatpush1.bf16.msra.mxu0 %v1749
    %1966 = vmatprep.subr.bf16.mxu0 %v1754
    %1967 = vmatpush1.bf16.msra.mxu0 %v1753
    %1968 = vmatprep.subr.bf16.mxu0 %v1758
    %1969 = vmatpush1.bf16.msra.mxu0 %v1757
    %1970 = vmatprep.subr.bf16.mxu0 %v1762
    %1971 = vmatpush1.bf16.msra.mxu0 %v1761
    %1972 = vmatprep.subr.bf16.mxu0 %v1766
    %1973 = vmatpush1.bf16.msra.mxu0 %v1765
    %1974 = vmatprep.subr.bf16.mxu0 %v1770
    %1975 = vmatpush1.bf16.msra.mxu0 %v1769
    %1976 = vmatprep.subr.bf16.mxu0 %v1774
    %1977 = vmatpush1.bf16.msra.mxu0 %v1773
    %1978 = vmatprep.mubr.bf16.mxu0 %v1099
    %1979 = vmatmul.mubr.bf16.gmra.mrb[0].mxu0 %v1098
    %v1980 = vpop.f32.mrb[0].mxu0
    %v1981 = vadd.f32 %v1940, %v1980
    %v1982 = vpop.f32.mrb[0].mxu0
    %v1983 = vadd.f32 %v1942, %v1982
    %v1984 = vpop.f32.mrb[0].mxu0
    %v1985 = vpop.f32.mrb[0].mxu0
    %1986 = vdwg.mxu0
    %1987 = vmatprep.subr.bf16.mxu0 %v1652
    %1988 = vmatpush1.bf16.msra.mxu0 %v1651
    %1989 = vmatprep.subr.bf16.mxu0 %v1656
    %1990 = vmatpush1.bf16.msra.mxu0 %v1655
    %1991 = vmatprep.subr.bf16.mxu0 %v1660
    %1992 = vmatpush1.bf16.msra.mxu0 %v1659
    %1993 = vmatprep.subr.bf16.mxu0 %v1664
    %1994 = vmatpush1.bf16.msra.mxu0 %v1663
    %1995 = vmatprep.subr.bf16.mxu0 %v1668
    %1996 = vmatpush1.bf16.msra.mxu0 %v1667
    %1997 = vmatprep.subr.bf16.mxu0 %v1672
    %1998 = vmatpush1.bf16.msra.mxu0 %v1671
    %1999 = vmatprep.subr.bf16.mxu0 %v1676
    %2000 = vmatpush1.bf16.msra.mxu0 %v1675
    %2001 = vmatprep.subr.bf16.mxu0 %v1680
    %2002 = vmatpush1.bf16.msra.mxu0 %v1679
    %2003 = vmatprep.subr.bf16.mxu0 %v1684
    %2004 = vmatpush1.bf16.msra.mxu0 %v1683
    %2005 = vmatprep.subr.bf16.mxu0 %v1688
    %2006 = vmatpush1.bf16.msra.mxu0 %v1687
    %2007 = vmatprep.subr.bf16.mxu0 %v1692
    %2008 = vmatpush1.bf16.msra.mxu0 %v1691
    %2009 = vmatprep.subr.bf16.mxu0 %v1696
    %2010 = vmatpush1.bf16.msra.mxu0 %v1695
    %2011 = vmatprep.subr.bf16.mxu0 %v1700
    %2012 = vmatpush1.bf16.msra.mxu0 %v1699
    %2013 = vmatprep.subr.bf16.mxu0 %v1704
    %2014 = vmatpush1.bf16.msra.mxu0 %v1703
    %2015 = vmatprep.subr.bf16.mxu0 %v1708
    %2016 = vmatpush1.bf16.msra.mxu0 %v1707
    %2017 = vmatprep.subr.bf16.mxu0 %v1712
    %2018 = vmatpush1.bf16.msra.mxu0 %v1711
    %2019 = vmatprep.mubr.bf16.mxu0 %v1097
    %2020 = vmatmul.mubr.bf16.gmra.mrb[0].mxu0 %v1096
    %v2021 = vpop.f32.mrb[0].mxu0
    %v2022 = vadd.f32 %v1260, %v2021
    %v2023 = vpop.f32.mrb[0].mxu0
    %v2024 = vadd.f32 %v1264, %v2023
    %v2025 = vpop.f32.mrb[0].mxu0
    %v2026 = vpop.f32.mrb[0].mxu0
    %2027 = vdwg.mxu0
    %2028 = vmatprep.subr.bf16.mxu0 %v1716
    %2029 = vmatpush1.bf16.msra.mxu0 %v1715
    %2030 = vmatprep.subr.bf16.mxu0 %v1720
    %2031 = vmatpush1.bf16.msra.mxu0 %v1719
    %2032 = vmatprep.subr.bf16.mxu0 %v1724
    %2033 = vmatpush1.bf16.msra.mxu0 %v1723
    %2034 = vmatprep.subr.bf16.mxu0 %v1728
    %2035 = vmatpush1.bf16.msra.mxu0 %v1727
    %2036 = vmatprep.subr.bf16.mxu0 %v1732
    %2037 = vmatpush1.bf16.msra.mxu0 %v1731
    %2038 = vmatprep.subr.bf16.mxu0 %v1736
    %2039 = vmatpush1.bf16.msra.mxu0 %v1735
    %2040 = vmatprep.subr.bf16.mxu0 %v1740
    %2041 = vmatpush1.bf16.msra.mxu0 %v1739
    %2042 = vmatprep.subr.bf16.mxu0 %v1744
    %2043 = vmatpush1.bf16.msra.mxu0 %v1743
    %2044 = vmatprep.subr.bf16.mxu0 %v1748
    %2045 = vmatpush1.bf16.msra.mxu0 %v1747
    %2046 = vmatprep.subr.bf16.mxu0 %v1752
    %2047 = vmatpush1.bf16.msra.mxu0 %v1751
    %2048 = vmatprep.subr.bf16.mxu0 %v1756
    %2049 = vmatpush1.bf16.msra.mxu0 %v1755
    %2050 = vmatprep.subr.bf16.mxu0 %v1760
    %2051 = vmatpush1.bf16.msra.mxu0 %v1759
    %2052 = vmatprep.subr.bf16.mxu0 %v1764
    %2053 = vmatpush1.bf16.msra.mxu0 %v1763
    %2054 = vmatprep.subr.bf16.mxu0 %v1768
    %2055 = vmatpush1.bf16.msra.mxu0 %v1767
    %2056 = vmatprep.subr.bf16.mxu0 %v1772
    %2057 = vmatpush1.bf16.msra.mxu0 %v1771
    %2058 = vmatprep.subr.bf16.mxu0 %v1776
    %2059 = vmatpush1.bf16.msra.mxu0 %v1775
    %2060 = vmatprep.mubr.bf16.mxu0 %v1099
    %2061 = vmatmul.mubr.bf16.gmra.mrb[0].mxu0 %v1098
    %v2062 = vpop.f32.mrb[0].mxu0
    %v2063 = vadd.f32 %v2022, %v2062
    %v2064 = vpop.f32.mrb[0].mxu0
    %v2065 = vadd.f32 %v2024, %v2064
    %v2066 = vpop.f32.mrb[0].mxu0
    %v2067 = vpop.f32.mrb[0].mxu0
    %2068 = vdwg.mxu0
    %vm2069 = vcmp.ge.f32.partialorder %v1981, 0.0
    %vm2070 = vcmp.ge.f32.partialorder %v1983, 0.0
    %vm2071 = vcmp.ge.f32.partialorder %v2063, 0.0
    %vm2072 = vcmp.ge.f32.partialorder %v2065, 0.0
    %v2073 = vmul.f32 %v1981, 0.2
    %v2074 = vmul.f32 %v1983, 0.2
    %v2075 = vmul.f32 %v2063, 0.2
    %v2076 = vmul.f32 %v2065, 0.2
    %v2077 = vsel %vm2069, %v1981, %v2073
    %v2078 = vsel %vm2070, %v1983, %v2074
    %v2079 = vsel %vm2071, %v2063, %v2075
    %v2080 = vsel %vm2072, %v2065, %v2076
    %v2081 = vmul.f32 %v2077, 1.4142135
    %v2082 = vmul.f32 %v2078, 1.4142135
    %v2083 = vmul.f32 %v2079, 1.4142135
    %v2084 = vmul.f32 %v2080, 1.4142135
    %v2085 = vpack.c.bf16 %v2081, %v2081
    %v2086 = vpack.c.bf16 %v2082, %v2082
    %v2087 = vpack.c.bf16 %v2083, %v2083
    %v2088 = vpack.c.bf16 %v2084, %v2084
    %s2089 = scalar_lea.vmem [#allocation5], 2048
    %v2090 = vld [vmem:[%s2089] sm:$0xff]
    %v2091 = vld [vmem:[%s2089 + $0x8] sm:$0xff]
    %v2092 = vld [vmem:[%s2089 + $0x10] sm:$0xff]
    %v2093 = vld [vmem:[%s2089 + $0x18] sm:$0xff]
    %v2094 = vld [vmem:[%s2089 + $0x20] sm:$0xff]
    %v2095 = vld [vmem:[%s2089 + $0x28] sm:$0xff]
    %v2096 = vld [vmem:[%s2089 + $0x30] sm:$0xff]
    %v2097 = vld [vmem:[%s2089 + $0x38] sm:$0xff]
    %v2098 = vld [vmem:[%s2089 + $0x40] sm:$0xff]
    %v2099 = vld [vmem:[%s2089 + $0x48] sm:$0xff]
    %v2100 = vld [vmem:[%s2089 + $0x50] sm:$0xff]
    %v2101 = vld [vmem:[%s2089 + $0x58] sm:$0xff]
    %v2102 = vld [vmem:[%s2089 + $0x60] sm:$0xff]
    %v2103 = vld [vmem:[%s2089 + $0x68] sm:$0xff]
    %v2104 = vld [vmem:[%s2089 + $0x70] sm:$0xff]
    %v2105 = vld [vmem:[%s2089 + $0x78] sm:$0xff]
    %v2106 = vld [vmem:[%s2089 + $0x80] sm:$0xff]
    %v2107 = vld [vmem:[%s2089 + $0x88] sm:$0xff]
    %v2108 = vld [vmem:[%s2089 + $0x90] sm:$0xff]
    %v2109 = vld [vmem:[%s2089 + $0x98] sm:$0xff]
    %v2110 = vld [vmem:[%s2089 + $0xa0] sm:$0xff]
    %v2111 = vld [vmem:[%s2089 + $0xa8] sm:$0xff]
    %v2112 = vld [vmem:[%s2089 + $0xb0] sm:$0xff]
    %v2113 = vld [vmem:[%s2089 + $0xb8] sm:$0xff]
    %v2114 = vld [vmem:[%s2089 + $0xc0] sm:$0xff]
    %v2115 = vld [vmem:[%s2089 + $0xc8] sm:$0xff]
    %v2116 = vld [vmem:[%s2089 + $0xd0] sm:$0xff]
    %v2117 = vld [vmem:[%s2089 + $0xd8] sm:$0xff]
    %v2118 = vld [vmem:[%s2089 + $0xe0] sm:$0xff]
    %v2119 = vld [vmem:[%s2089 + $0xe8] sm:$0xff]
    %v2120 = vld [vmem:[%s2089 + $0xf0] sm:$0xff]
    %v2121 = vld [vmem:[%s2089 + $0xf8] sm:$0xff]
    %v2122 = vld [vmem:[%s2089 + $0x100] sm:$0xff]
    %v2123 = vld [vmem:[%s2089 + $0x108] sm:$0xff]
    %v2124 = vld [vmem:[%s2089 + $0x110] sm:$0xff]
    %v2125 = vld [vmem:[%s2089 + $0x118] sm:$0xff]
    %v2126 = vld [vmem:[%s2089 + $0x120] sm:$0xff]
    %v2127 = vld [vmem:[%s2089 + $0x128] sm:$0xff]
    %v2128 = vld [vmem:[%s2089 + $0x130] sm:$0xff]
    %v2129 = vld [vmem:[%s2089 + $0x138] sm:$0xff]
    %v2130 = vld [vmem:[%s2089 + $0x140] sm:$0xff]
    %v2131 = vld [vmem:[%s2089 + $0x148] sm:$0xff]
    %v2132 = vld [vmem:[%s2089 + $0x150] sm:$0xff]
    %v2133 = vld [vmem:[%s2089 + $0x158] sm:$0xff]
    %v2134 = vld [vmem:[%s2089 + $0x160] sm:$0xff]
    %v2135 = vld [vmem:[%s2089 + $0x168] sm:$0xff]
    %v2136 = vld [vmem:[%s2089 + $0x170] sm:$0xff]
    %v2137 = vld [vmem:[%s2089 + $0x178] sm:$0xff]
    %v2138 = vld [vmem:[%s2089 + $0x180] sm:$0xff]
    %v2139 = vld [vmem:[%s2089 + $0x188] sm:$0xff]
    %v2140 = vld [vmem:[%s2089 + $0x190] sm:$0xff]
    %v2141 = vld [vmem:[%s2089 + $0x198] sm:$0xff]
    %v2142 = vld [vmem:[%s2089 + $0x1a0] sm:$0xff]
    %v2143 = vld [vmem:[%s2089 + $0x1a8] sm:$0xff]
    %v2144 = vld [vmem:[%s2089 + $0x1b0] sm:$0xff]
    %v2145 = vld [vmem:[%s2089 + $0x1b8] sm:$0xff]
    %v2146 = vld [vmem:[%s2089 + $0x1c0] sm:$0xff]
    %v2147 = vld [vmem:[%s2089 + $0x1c8] sm:$0xff]
    %v2148 = vld [vmem:[%s2089 + $0x1d0] sm:$0xff]
    %v2149 = vld [vmem:[%s2089 + $0x1d8] sm:$0xff]
    %v2150 = vld [vmem:[%s2089 + $0x1e0] sm:$0xff]
    %v2151 = vld [vmem:[%s2089 + $0x1e8] sm:$0xff]
    %v2152 = vld [vmem:[%s2089 + $0x1f0] sm:$0xff]
    %v2153 = vld [vmem:[%s2089 + $0x1f8] sm:$0xff]
    %v2154 = vld [vmem:[%s2089 + $0x200] sm:$0xff]
    %v2155 = vld [vmem:[%s2089 + $0x208] sm:$0xff]
    %v2156 = vld [vmem:[%s2089 + $0x210] sm:$0xff]
    %v2157 = vld [vmem:[%s2089 + $0x218] sm:$0xff]
    %v2158 = vld [vmem:[%s2089 + $0x220] sm:$0xff]
    %v2159 = vld [vmem:[%s2089 + $0x228] sm:$0xff]
    %v2160 = vld [vmem:[%s2089 + $0x230] sm:$0xff]
    %v2161 = vld [vmem:[%s2089 + $0x238] sm:$0xff]
    %v2162 = vld [vmem:[%s2089 + $0x240] sm:$0xff]
    %v2163 = vld [vmem:[%s2089 + $0x248] sm:$0xff]
    %v2164 = vld [vmem:[%s2089 + $0x250] sm:$0xff]
    %v2165 = vld [vmem:[%s2089 + $0x258] sm:$0xff]
    %v2166 = vld [vmem:[%s2089 + $0x260] sm:$0xff]
    %v2167 = vld [vmem:[%s2089 + $0x268] sm:$0xff]
    %v2168 = vld [vmem:[%s2089 + $0x270] sm:$0xff]
    %v2169 = vld [vmem:[%s2089 + $0x278] sm:$0xff]
    %v2170 = vld [vmem:[%s2089 + $0x280] sm:$0xff]
    %v2171 = vld [vmem:[%s2089 + $0x288] sm:$0xff]
    %v2172 = vld [vmem:[%s2089 + $0x290] sm:$0xff]
    %v2173 = vld [vmem:[%s2089 + $0x298] sm:$0xff]
    %v2174 = vld [vmem:[%s2089 + $0x2a0] sm:$0xff]
    %v2175 = vld [vmem:[%s2089 + $0x2a8] sm:$0xff]
    %v2176 = vld [vmem:[%s2089 + $0x2b0] sm:$0xff]
    %v2177 = vld [vmem:[%s2089 + $0x2b8] sm:$0xff]
    %v2178 = vld [vmem:[%s2089 + $0x2c0] sm:$0xff]
    %v2179 = vld [vmem:[%s2089 + $0x2c8] sm:$0xff]
    %v2180 = vld [vmem:[%s2089 + $0x2d0] sm:$0xff]
    %v2181 = vld [vmem:[%s2089 + $0x2d8] sm:$0xff]
    %v2182 = vld [vmem:[%s2089 + $0x2e0] sm:$0xff]
    %v2183 = vld [vmem:[%s2089 + $0x2e8] sm:$0xff]
    %v2184 = vld [vmem:[%s2089 + $0x2f0] sm:$0xff]
    %v2185 = vld [vmem:[%s2089 + $0x2f8] sm:$0xff]
    %v2186 = vld [vmem:[%s2089 + $0x300] sm:$0xff]
    %v2187 = vld [vmem:[%s2089 + $0x308] sm:$0xff]
    %v2188 = vld [vmem:[%s2089 + $0x310] sm:$0xff]
    %v2189 = vld [vmem:[%s2089 + $0x318] sm:$0xff]
    %v2190 = vld [vmem:[%s2089 + $0x320] sm:$0xff]
    %v2191 = vld [vmem:[%s2089 + $0x328] sm:$0xff]
    %v2192 = vld [vmem:[%s2089 + $0x330] sm:$0xff]
    %v2193 = vld [vmem:[%s2089 + $0x338] sm:$0xff]
    %v2194 = vld [vmem:[%s2089 + $0x340] sm:$0xff]
    %v2195 = vld [vmem:[%s2089 + $0x348] sm:$0xff]
    %v2196 = vld [vmem:[%s2089 + $0x350] sm:$0xff]
    %v2197 = vld [vmem:[%s2089 + $0x358] sm:$0xff]
    %v2198 = vld [vmem:[%s2089 + $0x360] sm:$0xff]
    %v2199 = vld [vmem:[%s2089 + $0x368] sm:$0xff]
    %v2200 = vld [vmem:[%s2089 + $0x370] sm:$0xff]
    %v2201 = vld [vmem:[%s2089 + $0x378] sm:$0xff]
    %v2202 = vld [vmem:[%s2089 + $0x380] sm:$0xff]
    %v2203 = vld [vmem:[%s2089 + $0x388] sm:$0xff]
    %v2204 = vld [vmem:[%s2089 + $0x390] sm:$0xff]
    %v2205 = vld [vmem:[%s2089 + $0x398] sm:$0xff]
    %v2206 = vld [vmem:[%s2089 + $0x3a0] sm:$0xff]
    %v2207 = vld [vmem:[%s2089 + $0x3a8] sm:$0xff]
    %v2208 = vld [vmem:[%s2089 + $0x3b0] sm:$0xff]
    %v2209 = vld [vmem:[%s2089 + $0x3b8] sm:$0xff]
    %v2210 = vld [vmem:[%s2089 + $0x3c0] sm:$0xff]
    %v2211 = vld [vmem:[%s2089 + $0x3c8] sm:$0xff]
    %v2212 = vld [vmem:[%s2089 + $0x3d0] sm:$0xff]
    %v2213 = vld [vmem:[%s2089 + $0x3d8] sm:$0xff]
    %v2214 = vld [vmem:[%s2089 + $0x3e0] sm:$0xff]
    %v2215 = vld [vmem:[%s2089 + $0x3e8] sm:$0xff]
    %v2216 = vld [vmem:[%s2089 + $0x3f0] sm:$0xff]
    %v2217 = vld [vmem:[%s2089 + $0x3f8] sm:$0xff]
    %v2218 = vlaneseq
    %v2219 = vshrl.u32 %v2218, 7
    %v2220 = vsub.s32 2, %v2219
    %v2221 = vrot.slane %v104, %v2220
    %v2222 = vlaneseq
    %v2223 = vshrl.u32 %v2222, 7
    %v2224 = vsub.s32 6, %v2223
    %v2225 = vrot.slane %v104, %v2224
    %v2226 = vlaneseq
    %v2227 = vshrl.u32 %v2226, 7
    %v2228 = vsub.s32 2, %v2227
    %v2229 = vrot.slane %v105, %v2228
    %v2230 = vlaneseq
    %v2231 = vshrl.u32 %v2230, 7
    %v2232 = vsub.s32 6, %v2231
    %v2233 = vrot.slane %v105, %v2232
    %v2238 = vlaneseq
    %v2239 = vshrl.u32 %v2238, 7
    %v2240 = vsub.s32 2, %v2239
    %v2241 = vrot.slane %v2221, %v2240
    %v2242 = vlaneseq
    %v2243 = vshrl.u32 %v2242, 7
    %v2244 = vsub.s32 2, %v2243
    %v2245 = vrot.slane %v2225, %v2244
    %v2246 = vlaneseq
    %v2247 = vshrl.u32 %v2246, 7
    %v2248 = vsub.s32 2, %v2247
    %v2249 = vrot.slane %v2229, %v2248
    %v2250 = vlaneseq
    %v2251 = vshrl.u32 %v2250, 7
    %v2252 = vsub.s32 2, %v2251
    %v2253 = vrot.slane %v2233, %v2252
    %v2382 = vunpack.c.l.b16 %v2090
    %v2383 = vunpack.c.h.b16 %v2090
    %v2384 = vunpack.c.l.b16 %v2091
    %v2385 = vunpack.c.h.b16 %v2091
    %v2386 = vunpack.c.l.b16 %v2092
    %v2387 = vunpack.c.h.b16 %v2092
    %v2388 = vunpack.c.l.b16 %v2093
    %v2389 = vunpack.c.h.b16 %v2093
    %v2390 = vunpack.c.l.b16 %v2094
    %v2391 = vunpack.c.h.b16 %v2094
    %v2392 = vunpack.c.l.b16 %v2095
    %v2393 = vunpack.c.h.b16 %v2095
    %v2394 = vunpack.c.l.b16 %v2096
    %v2395 = vunpack.c.h.b16 %v2096
    %v2396 = vunpack.c.l.b16 %v2097
    %v2397 = vunpack.c.h.b16 %v2097
    %v2398 = vunpack.c.l.b16 %v2098
    %v2399 = vunpack.c.h.b16 %v2098
    %v2400 = vunpack.c.l.b16 %v2099
    %v2401 = vunpack.c.h.b16 %v2099
    %v2402 = vunpack.c.l.b16 %v2100
    %v2403 = vunpack.c.h.b16 %v2100
    %v2404 = vunpack.c.l.b16 %v2101
    %v2405 = vunpack.c.h.b16 %v2101
    %v2406 = vunpack.c.l.b16 %v2102
    %v2407 = vunpack.c.h.b16 %v2102
    %v2408 = vunpack.c.l.b16 %v2103
    %v2409 = vunpack.c.h.b16 %v2103
    %v2410 = vunpack.c.l.b16 %v2104
    %v2411 = vunpack.c.h.b16 %v2104
    %v2412 = vunpack.c.l.b16 %v2105
    %v2413 = vunpack.c.h.b16 %v2105
    %v2414 = vunpack.c.l.b16 %v2106
    %v2415 = vunpack.c.h.b16 %v2106
    %v2416 = vunpack.c.l.b16 %v2107
    %v2417 = vunpack.c.h.b16 %v2107
    %v2418 = vunpack.c.l.b16 %v2108
    %v2419 = vunpack.c.h.b16 %v2108
    %v2420 = vunpack.c.l.b16 %v2109
    %v2421 = vunpack.c.h.b16 %v2109
    %v2422 = vunpack.c.l.b16 %v2110
    %v2423 = vunpack.c.h.b16 %v2110
    %v2424 = vunpack.c.l.b16 %v2111
    %v2425 = vunpack.c.h.b16 %v2111
    %v2426 = vunpack.c.l.b16 %v2112
    %v2427 = vunpack.c.h.b16 %v2112
    %v2428 = vunpack.c.l.b16 %v2113
    %v2429 = vunpack.c.h.b16 %v2113
    %v2430 = vunpack.c.l.b16 %v2114
    %v2431 = vunpack.c.h.b16 %v2114
    %v2432 = vunpack.c.l.b16 %v2115
    %v2433 = vunpack.c.h.b16 %v2115
    %v2434 = vunpack.c.l.b16 %v2116
    %v2435 = vunpack.c.h.b16 %v2116
    %v2436 = vunpack.c.l.b16 %v2117
    %v2437 = vunpack.c.h.b16 %v2117
    %v2438 = vunpack.c.l.b16 %v2118
    %v2439 = vunpack.c.h.b16 %v2118
    %v2440 = vunpack.c.l.b16 %v2119
    %v2441 = vunpack.c.h.b16 %v2119
    %v2442 = vunpack.c.l.b16 %v2120
    %v2443 = vunpack.c.h.b16 %v2120
    %v2444 = vunpack.c.l.b16 %v2121
    %v2445 = vunpack.c.h.b16 %v2121
    %v2446 = vunpack.c.l.b16 %v2122
    %v2447 = vunpack.c.h.b16 %v2122
    %v2448 = vunpack.c.l.b16 %v2123
    %v2449 = vunpack.c.h.b16 %v2123
    %v2450 = vunpack.c.l.b16 %v2124
    %v2451 = vunpack.c.h.b16 %v2124
    %v2452 = vunpack.c.l.b16 %v2125
    %v2453 = vunpack.c.h.b16 %v2125
    %v2454 = vunpack.c.l.b16 %v2126
    %v2455 = vunpack.c.h.b16 %v2126
    %v2456 = vunpack.c.l.b16 %v2127
    %v2457 = vunpack.c.h.b16 %v2127
    %v2458 = vunpack.c.l.b16 %v2128
    %v2459 = vunpack.c.h.b16 %v2128
    %v2460 = vunpack.c.l.b16 %v2129
    %v2461 = vunpack.c.h.b16 %v2129
    %v2462 = vunpack.c.l.b16 %v2130
    %v2463 = vunpack.c.h.b16 %v2130
    %v2464 = vunpack.c.l.b16 %v2131
    %v2465 = vunpack.c.h.b16 %v2131
    %v2466 = vunpack.c.l.b16 %v2132
    %v2467 = vunpack.c.h.b16 %v2132
    %v2468 = vunpack.c.l.b16 %v2133
    %v2469 = vunpack.c.h.b16 %v2133
    %v2470 = vunpack.c.l.b16 %v2134
    %v2471 = vunpack.c.h.b16 %v2134
    %v2472 = vunpack.c.l.b16 %v2135
    %v2473 = vunpack.c.h.b16 %v2135
    %v2474 = vunpack.c.l.b16 %v2136
    %v2475 = vunpack.c.h.b16 %v2136
    %v2476 = vunpack.c.l.b16 %v2137
    %v2477 = vunpack.c.h.b16 %v2137
    %v2478 = vunpack.c.l.b16 %v2138
    %v2479 = vunpack.c.h.b16 %v2138
    %v2480 = vunpack.c.l.b16 %v2139
    %v2481 = vunpack.c.h.b16 %v2139
    %v2482 = vunpack.c.l.b16 %v2140
    %v2483 = vunpack.c.h.b16 %v2140
    %v2484 = vunpack.c.l.b16 %v2141
    %v2485 = vunpack.c.h.b16 %v2141
    %v2486 = vunpack.c.l.b16 %v2142
    %v2487 = vunpack.c.h.b16 %v2142
    %v2488 = vunpack.c.l.b16 %v2143
    %v2489 = vunpack.c.h.b16 %v2143
    %v2490 = vunpack.c.l.b16 %v2144
    %v2491 = vunpack.c.h.b16 %v2144
    %v2492 = vunpack.c.l.b16 %v2145
    %v2493 = vunpack.c.h.b16 %v2145
    %v2494 = vunpack.c.l.b16 %v2146
    %v2495 = vunpack.c.h.b16 %v2146
    %v2496 = vunpack.c.l.b16 %v2147
    %v2497 = vunpack.c.h.b16 %v2147
    %v2498 = vunpack.c.l.b16 %v2148
    %v2499 = vunpack.c.h.b16 %v2148
    %v2500 = vunpack.c.l.b16 %v2149
    %v2501 = vunpack.c.h.b16 %v2149
    %v2502 = vunpack.c.l.b16 %v2150
    %v2503 = vunpack.c.h.b16 %v2150
    %v2504 = vunpack.c.l.b16 %v2151
    %v2505 = vunpack.c.h.b16 %v2151
    %v2506 = vunpack.c.l.b16 %v2152
    %v2507 = vunpack.c.h.b16 %v2152
    %v2508 = vunpack.c.l.b16 %v2153
    %v2509 = vunpack.c.h.b16 %v2153
    %v2510 = vunpack.c.l.b16 %v2154
    %v2511 = vunpack.c.h.b16 %v2154
    %v2512 = vunpack.c.l.b16 %v2155
    %v2513 = vunpack.c.h.b16 %v2155
    %v2514 = vunpack.c.l.b16 %v2156
    %v2515 = vunpack.c.h.b16 %v2156
    %v2516 = vunpack.c.l.b16 %v2157
    %v2517 = vunpack.c.h.b16 %v2157
    %v2518 = vunpack.c.l.b16 %v2158
    %v2519 = vunpack.c.h.b16 %v2158
    %v2520 = vunpack.c.l.b16 %v2159
    %v2521 = vunpack.c.h.b16 %v2159
    %v2522 = vunpack.c.l.b16 %v2160
    %v2523 = vunpack.c.h.b16 %v2160
    %v2524 = vunpack.c.l.b16 %v2161
    %v2525 = vunpack.c.h.b16 %v2161
    %v2526 = vunpack.c.l.b16 %v2162
    %v2527 = vunpack.c.h.b16 %v2162
    %v2528 = vunpack.c.l.b16 %v2163
    %v2529 = vunpack.c.h.b16 %v2163
    %v2530 = vunpack.c.l.b16 %v2164
    %v2531 = vunpack.c.h.b16 %v2164
    %v2532 = vunpack.c.l.b16 %v2165
    %v2533 = vunpack.c.h.b16 %v2165
    %v2534 = vunpack.c.l.b16 %v2166
    %v2535 = vunpack.c.h.b16 %v2166
    %v2536 = vunpack.c.l.b16 %v2167
    %v2537 = vunpack.c.h.b16 %v2167
    %v2538 = vunpack.c.l.b16 %v2168
    %v2539 = vunpack.c.h.b16 %v2168
    %v2540 = vunpack.c.l.b16 %v2169
    %v2541 = vunpack.c.h.b16 %v2169
    %v2542 = vunpack.c.l.b16 %v2170
    %v2543 = vunpack.c.h.b16 %v2170
    %v2544 = vunpack.c.l.b16 %v2171
    %v2545 = vunpack.c.h.b16 %v2171
    %v2546 = vunpack.c.l.b16 %v2172
    %v2547 = vunpack.c.h.b16 %v2172
    %v2548 = vunpack.c.l.b16 %v2173
    %v2549 = vunpack.c.h.b16 %v2173
    %v2550 = vunpack.c.l.b16 %v2174
    %v2551 = vunpack.c.h.b16 %v2174
    %v2552 = vunpack.c.l.b16 %v2175
    %v2553 = vunpack.c.h.b16 %v2175
    %v2554 = vunpack.c.l.b16 %v2176
    %v2555 = vunpack.c.h.b16 %v2176
    %v2556 = vunpack.c.l.b16 %v2177
    %v2557 = vunpack.c.h.b16 %v2177
    %v2558 = vunpack.c.l.b16 %v2178
    %v2559 = vunpack.c.h.b16 %v2178
    %v2560 = vunpack.c.l.b16 %v2179
    %v2561 = vunpack.c.h.b16 %v2179
    %v2562 = vunpack.c.l.b16 %v2180
    %v2563 = vunpack.c.h.b16 %v2180
    %v2564 = vunpack.c.l.b16 %v2181
    %v2565 = vunpack.c.h.b16 %v2181
    %v2566 = vunpack.c.l.b16 %v2182
    %v2567 = vunpack.c.h.b16 %v2182
    %v2568 = vunpack.c.l.b16 %v2183
    %v2569 = vunpack.c.h.b16 %v2183
    %v2570 = vunpack.c.l.b16 %v2184
    %v2571 = vunpack.c.h.b16 %v2184
    %v2572 = vunpack.c.l.b16 %v2185
    %v2573 = vunpack.c.h.b16 %v2185
    %v2574 = vunpack.c.l.b16 %v2186
    %v2575 = vunpack.c.h.b16 %v2186
    %v2576 = vunpack.c.l.b16 %v2187
    %v2577 = vunpack.c.h.b16 %v2187
    %v2578 = vunpack.c.l.b16 %v2188
    %v2579 = vunpack.c.h.b16 %v2188
    %v2580 = vunpack.c.l.b16 %v2189
    %v2581 = vunpack.c.h.b16 %v2189
    %v2582 = vunpack.c.l.b16 %v2190
    %v2583 = vunpack.c.h.b16 %v2190
    %v2584 = vunpack.c.l.b16 %v2191
    %v2585 = vunpack.c.h.b16 %v2191
    %v2586 = vunpack.c.l.b16 %v2192
    %v2587 = vunpack.c.h.b16 %v2192
    %v2588 = vunpack.c.l.b16 %v2193
    %v2589 = vunpack.c.h.b16 %v2193
    %v2590 = vunpack.c.l.b16 %v2194
    %v2591 = vunpack.c.h.b16 %v2194
    %v2592 = vunpack.c.l.b16 %v2195
    %v2593 = vunpack.c.h.b16 %v2195
    %v2594 = vunpack.c.l.b16 %v2196
    %v2595 = vunpack.c.h.b16 %v2196
    %v2596 = vunpack.c.l.b16 %v2197
    %v2597 = vunpack.c.h.b16 %v2197
    %v2598 = vunpack.c.l.b16 %v2198
    %v2599 = vunpack.c.h.b16 %v2198
    %v2600 = vunpack.c.l.b16 %v2199
    %v2601 = vunpack.c.h.b16 %v2199
    %v2602 = vunpack.c.l.b16 %v2200
    %v2603 = vunpack.c.h.b16 %v2200
    %v2604 = vunpack.c.l.b16 %v2201
    %v2605 = vunpack.c.h.b16 %v2201
    %v2606 = vunpack.c.l.b16 %v2202
    %v2607 = vunpack.c.h.b16 %v2202
    %v2608 = vunpack.c.l.b16 %v2203
    %v2609 = vunpack.c.h.b16 %v2203
    %v2610 = vunpack.c.l.b16 %v2204
    %v2611 = vunpack.c.h.b16 %v2204
    %v2612 = vunpack.c.l.b16 %v2205
    %v2613 = vunpack.c.h.b16 %v2205
    %v2614 = vunpack.c.l.b16 %v2206
    %v2615 = vunpack.c.h.b16 %v2206
    %v2616 = vunpack.c.l.b16 %v2207
    %v2617 = vunpack.c.h.b16 %v2207
    %v2618 = vunpack.c.l.b16 %v2208
    %v2619 = vunpack.c.h.b16 %v2208
    %v2620 = vunpack.c.l.b16 %v2209
    %v2621 = vunpack.c.h.b16 %v2209
    %v2622 = vunpack.c.l.b16 %v2210
    %v2623 = vunpack.c.h.b16 %v2210
    %v2624 = vunpack.c.l.b16 %v2211
    %v2625 = vunpack.c.h.b16 %v2211
    %v2626 = vunpack.c.l.b16 %v2212
    %v2627 = vunpack.c.h.b16 %v2212
    %v2628 = vunpack.c.l.b16 %v2213
    %v2629 = vunpack.c.h.b16 %v2213
    %v2630 = vunpack.c.l.b16 %v2214
    %v2631 = vunpack.c.h.b16 %v2214
    %v2632 = vunpack.c.l.b16 %v2215
    %v2633 = vunpack.c.h.b16 %v2215
    %v2634 = vunpack.c.l.b16 %v2216
    %v2635 = vunpack.c.h.b16 %v2216
    %v2636 = vunpack.c.l.b16 %v2217
    %v2637 = vunpack.c.h.b16 %v2217
    %v2638 = vpack.c.b16 %v2386, %v2382
    %v2639 = vpack.c.b16 %v2387, %v2383
    %v2640 = vpack.c.b16 %v2388, %v2384
    %v2641 = vpack.c.b16 %v2389, %v2385
    %v2642 = vpack.c.b16 %v2394, %v2390
    %v2643 = vpack.c.b16 %v2395, %v2391
    %v2644 = vpack.c.b16 %v2396, %v2392
    %v2645 = vpack.c.b16 %v2397, %v2393
    %v2646 = vpack.c.b16 %v2402, %v2398
    %v2647 = vpack.c.b16 %v2403, %v2399
    %v2648 = vpack.c.b16 %v2404, %v2400
    %v2649 = vpack.c.b16 %v2405, %v2401
    %v2650 = vpack.c.b16 %v2410, %v2406
    %v2651 = vpack.c.b16 %v2411, %v2407
    %v2652 = vpack.c.b16 %v2412, %v2408
    %v2653 = vpack.c.b16 %v2413, %v2409
    %v2654 = vpack.c.b16 %v2418, %v2414
    %v2655 = vpack.c.b16 %v2419, %v2415
    %v2656 = vpack.c.b16 %v2420, %v2416
    %v2657 = vpack.c.b16 %v2421, %v2417
    %v2658 = vpack.c.b16 %v2426, %v2422
    %v2659 = vpack.c.b16 %v2427, %v2423
    %v2660 = vpack.c.b16 %v2428, %v2424
    %v2661 = vpack.c.b16 %v2429, %v2425
    %v2662 = vpack.c.b16 %v2434, %v2430
    %v2663 = vpack.c.b16 %v2435, %v2431
    %v2664 = vpack.c.b16 %v2436, %v2432
    %v2665 = vpack.c.b16 %v2437, %v2433
    %v2666 = vpack.c.b16 %v2442, %v2438
    %v2667 = vpack.c.b16 %v2443, %v2439
    %v2668 = vpack.c.b16 %v2444, %v2440
    %v2669 = vpack.c.b16 %v2445, %v2441
    %v2670 = vpack.c.b16 %v2450, %v2446
    %v2671 = vpack.c.b16 %v2451, %v2447
    %v2672 = vpack.c.b16 %v2452, %v2448
    %v2673 = vpack.c.b16 %v2453, %v2449
    %v2674 = vpack.c.b16 %v2458, %v2454
    %v2675 = vpack.c.b16 %v2459, %v2455
    %v2676 = vpack.c.b16 %v2460, %v2456
    %v2677 = vpack.c.b16 %v2461, %v2457
    %v2678 = vpack.c.b16 %v2466, %v2462
    %v2679 = vpack.c.b16 %v2467, %v2463
    %v2680 = vpack.c.b16 %v2468, %v2464
    %v2681 = vpack.c.b16 %v2469, %v2465
    %v2682 = vpack.c.b16 %v2474, %v2470
    %v2683 = vpack.c.b16 %v2475, %v2471
    %v2684 = vpack.c.b16 %v2476, %v2472
    %v2685 = vpack.c.b16 %v2477, %v2473
    %v2686 = vpack.c.b16 %v2482, %v2478
    %v2687 = vpack.c.b16 %v2483, %v2479
    %v2688 = vpack.c.b16 %v2484, %v2480
    %v2689 = vpack.c.b16 %v2485, %v2481
    %v2690 = vpack.c.b16 %v2490, %v2486
    %v2691 = vpack.c.b16 %v2491, %v2487
    %v2692 = vpack.c.b16 %v2492, %v2488
    %v2693 = vpack.c.b16 %v2493, %v2489
    %v2694 = vpack.c.b16 %v2498, %v2494
    %v2695 = vpack.c.b16 %v2499, %v2495
    %v2696 = vpack.c.b16 %v2500, %v2496
    %v2697 = vpack.c.b16 %v2501, %v2497
    %v2698 = vpack.c.b16 %v2506, %v2502
    %v2699 = vpack.c.b16 %v2507, %v2503
    %v2700 = vpack.c.b16 %v2508, %v2504
    %v2701 = vpack.c.b16 %v2509, %v2505
    %v2702 = vpack.c.b16 %v2514, %v2510
    %v2703 = vpack.c.b16 %v2515, %v2511
    %v2704 = vpack.c.b16 %v2516, %v2512
    %v2705 = vpack.c.b16 %v2517, %v2513
    %v2706 = vpack.c.b16 %v2522, %v2518
    %v2707 = vpack.c.b16 %v2523, %v2519
    %v2708 = vpack.c.b16 %v2524, %v2520
    %v2709 = vpack.c.b16 %v2525, %v2521
    %v2710 = vpack.c.b16 %v2530, %v2526
    %v2711 = vpack.c.b16 %v2531, %v2527
    %v2712 = vpack.c.b16 %v2532, %v2528
    %v2713 = vpack.c.b16 %v2533, %v2529
    %v2714 = vpack.c.b16 %v2538, %v2534
    %v2715 = vpack.c.b16 %v2539, %v2535
    %v2716 = vpack.c.b16 %v2540, %v2536
    %v2717 = vpack.c.b16 %v2541, %v2537
    %v2718 = vpack.c.b16 %v2546, %v2542
    %v2719 = vpack.c.b16 %v2547, %v2543
    %v2720 = vpack.c.b16 %v2548, %v2544
    %v2721 = vpack.c.b16 %v2549, %v2545
    %v2722 = vpack.c.b16 %v2554, %v2550
    %v2723 = vpack.c.b16 %v2555, %v2551
    %v2724 = vpack.c.b16 %v2556, %v2552
    %v2725 = vpack.c.b16 %v2557, %v2553
    %v2726 = vpack.c.b16 %v2562, %v2558
    %v2727 = vpack.c.b16 %v2563, %v2559
    %v2728 = vpack.c.b16 %v2564, %v2560
    %v2729 = vpack.c.b16 %v2565, %v2561
    %v2730 = vpack.c.b16 %v2570, %v2566
    %v2731 = vpack.c.b16 %v2571, %v2567
    %v2732 = vpack.c.b16 %v2572, %v2568
    %v2733 = vpack.c.b16 %v2573, %v2569
    %v2734 = vpack.c.b16 %v2578, %v2574
    %v2735 = vpack.c.b16 %v2579, %v2575
    %v2736 = vpack.c.b16 %v2580, %v2576
    %v2737 = vpack.c.b16 %v2581, %v2577
    %v2738 = vpack.c.b16 %v2586, %v2582
    %v2739 = vpack.c.b16 %v2587, %v2583
    %v2740 = vpack.c.b16 %v2588, %v2584
    %v2741 = vpack.c.b16 %v2589, %v2585
    %v2742 = vpack.c.b16 %v2594, %v2590
    %v2743 = vpack.c.b16 %v2595, %v2591
    %v2744 = vpack.c.b16 %v2596, %v2592
    %v2745 = vpack.c.b16 %v2597, %v2593
    %v2746 = vpack.c.b16 %v2602, %v2598
    %v2747 = vpack.c.b16 %v2603, %v2599
    %v2748 = vpack.c.b16 %v2604, %v2600
    %v2749 = vpack.c.b16 %v2605, %v2601
    %v2750 = vpack.c.b16 %v2610, %v2606
    %v2751 = vpack.c.b16 %v2611, %v2607
    %v2752 = vpack.c.b16 %v2612, %v2608
    %v2753 = vpack.c.b16 %v2613, %v2609
    %v2754 = vpack.c.b16 %v2618, %v2614
    %v2755 = vpack.c.b16 %v2619, %v2615
    %v2756 = vpack.c.b16 %v2620, %v2616
    %v2757 = vpack.c.b16 %v2621, %v2617
    %v2758 = vpack.c.b16 %v2626, %v2622
    %v2759 = vpack.c.b16 %v2627, %v2623
    %v2760 = vpack.c.b16 %v2628, %v2624
    %v2761 = vpack.c.b16 %v2629, %v2625
    %v2762 = vpack.c.b16 %v2634, %v2630
    %v2763 = vpack.c.b16 %v2635, %v2631
    %v2764 = vpack.c.b16 %v2636, %v2632
    %v2765 = vpack.c.b16 %v2637, %v2633
    %2894 = vmatprep.subr.bf16.mxu0 %v2639
    %2895 = vmatpush1.bf16.msra.mxu0 %v2638
    %2896 = vmatprep.subr.bf16.mxu0 %v2643
    %2897 = vmatpush1.bf16.msra.mxu0 %v2642
    %2898 = vmatprep.subr.bf16.mxu0 %v2647
    %2899 = vmatpush1.bf16.msra.mxu0 %v2646
    %2900 = vmatprep.subr.bf16.mxu0 %v2651
    %2901 = vmatpush1.bf16.msra.mxu0 %v2650
    %2902 = vmatprep.subr.bf16.mxu0 %v2655
    %2903 = vmatpush1.bf16.msra.mxu0 %v2654
    %2904 = vmatprep.subr.bf16.mxu0 %v2659
    %2905 = vmatpush1.bf16.msra.mxu0 %v2658
    %2906 = vmatprep.subr.bf16.mxu0 %v2663
    %2907 = vmatpush1.bf16.msra.mxu0 %v2662
    %2908 = vmatprep.subr.bf16.mxu0 %v2667
    %2909 = vmatpush1.bf16.msra.mxu0 %v2666
    %2910 = vmatprep.subr.bf16.mxu0 %v2671
    %2911 = vmatpush1.bf16.msra.mxu0 %v2670
    %2912 = vmatprep.subr.bf16.mxu0 %v2675
    %2913 = vmatpush1.bf16.msra.mxu0 %v2674
    %2914 = vmatprep.subr.bf16.mxu0 %v2679
    %2915 = vmatpush1.bf16.msra.mxu0 %v2678
    %2916 = vmatprep.subr.bf16.mxu0 %v2683
    %2917 = vmatpush1.bf16.msra.mxu0 %v2682
    %2918 = vmatprep.subr.bf16.mxu0 %v2687
    %2919 = vmatpush1.bf16.msra.mxu0 %v2686
    %2920 = vmatprep.subr.bf16.mxu0 %v2691
    %2921 = vmatpush1.bf16.msra.mxu0 %v2690
    %2922 = vmatprep.subr.bf16.mxu0 %v2695
    %2923 = vmatpush1.bf16.msra.mxu0 %v2694
    %2924 = vmatprep.subr.bf16.mxu0 %v2699
    %2925 = vmatpush1.bf16.msra.mxu0 %v2698
    %2926 = vmatprep.mubr.bf16.mxu0 %v2086
    %2927 = vmatmul.mubr.bf16.gmra.mrb[0].mxu0 %v2085
    %v2928 = vpop.f32.mrb[0].mxu0
    %v2929 = vadd.f32 %v2241, %v2928
    %v2930 = vpop.f32.mrb[0].mxu0
    %v2931 = vadd.f32 %v2245, %v2930
    %v2932 = vpop.f32.mrb[0].mxu0
    %v2933 = vpop.f32.mrb[0].mxu0
    %2934 = vdwg.mxu0
    %2935 = vmatprep.subr.bf16.mxu0 %v2703
    %2936 = vmatpush1.bf16.msra.mxu0 %v2702
    %2937 = vmatprep.subr.bf16.mxu0 %v2707
    %2938 = vmatpush1.bf16.msra.mxu0 %v2706
    %2939 = vmatprep.subr.bf16.mxu0 %v2711
    %2940 = vmatpush1.bf16.msra.mxu0 %v2710
    %2941 = vmatprep.subr.bf16.mxu0 %v2715
    %2942 = vmatpush1.bf16.msra.mxu0 %v2714
    %2943 = vmatprep.subr.bf16.mxu0 %v2719
    %2944 = vmatpush1.bf16.msra.mxu0 %v2718
    %2945 = vmatprep.subr.bf16.mxu0 %v2723
    %2946 = vmatpush1.bf16.msra.mxu0 %v2722
    %2947 = vmatprep.subr.bf16.mxu0 %v2727
    %2948 = vmatpush1.bf16.msra.mxu0 %v2726
    %2949 = vmatprep.subr.bf16.mxu0 %v2731
    %2950 = vmatpush1.bf16.msra.mxu0 %v2730
    %2951 = vmatprep.subr.bf16.mxu0 %v2735
    %2952 = vmatpush1.bf16.msra.mxu0 %v2734
    %2953 = vmatprep.subr.bf16.mxu0 %v2739
    %2954 = vmatpush1.bf16.msra.mxu0 %v2738
    %2955 = vmatprep.subr.bf16.mxu0 %v2743
    %2956 = vmatpush1.bf16.msra.mxu0 %v2742
    %2957 = vmatprep.subr.bf16.mxu0 %v2747
    %2958 = vmatpush1.bf16.msra.mxu0 %v2746
    %2959 = vmatprep.subr.bf16.mxu0 %v2751
    %2960 = vmatpush1.bf16.msra.mxu0 %v2750
    %2961 = vmatprep.subr.bf16.mxu0 %v2755
    %2962 = vmatpush1.bf16.msra.mxu0 %v2754
    %2963 = vmatprep.subr.bf16.mxu0 %v2759
    %2964 = vmatpush1.bf16.msra.mxu0 %v2758
    %2965 = vmatprep.subr.bf16.mxu0 %v2763
    %2966 = vmatpush1.bf16.msra.mxu0 %v2762
    %2967 = vmatprep.mubr.bf16.mxu0 %v2088
    %2968 = vmatmul.mubr.bf16.gmra.mrb[0].mxu0 %v2087
    %v2969 = vpop.f32.mrb[0].mxu0
    %v2970 = vadd.f32 %v2929, %v2969
    %v2971 = vpop.f32.mrb[0].mxu0
    %v2972 = vadd.f32 %v2931, %v2971
    %v2973 = vpop.f32.mrb[0].mxu0
    %v2974 = vpop.f32.mrb[0].mxu0
    %2975 = vdwg.mxu0
    %2976 = vmatprep.subr.bf16.mxu0 %v2641
    %2977 = vmatpush1.bf16.msra.mxu0 %v2640
    %2978 = vmatprep.subr.bf16.mxu0 %v2645
    %2979 = vmatpush1.bf16.msra.mxu0 %v2644
    %2980 = vmatprep.subr.bf16.mxu0 %v2649
    %2981 = vmatpush1.bf16.msra.mxu0 %v2648
    %2982 = vmatprep.subr.bf16.mxu0 %v2653
    %2983 = vmatpush1.bf16.msra.mxu0 %v2652
    %2984 = vmatprep.subr.bf16.mxu0 %v2657
    %2985 = vmatpush1.bf16.msra.mxu0 %v2656
    %2986 = vmatprep.subr.bf16.mxu0 %v2661
    %2987 = vmatpush1.bf16.msra.mxu0 %v2660
    %2988 = vmatprep.subr.bf16.mxu0 %v2665
    %2989 = vmatpush1.bf16.msra.mxu0 %v2664
    %2990 = vmatprep.subr.bf16.mxu0 %v2669
    %2991 = vmatpush1.bf16.msra.mxu0 %v2668
    %2992 = vmatprep.subr.bf16.mxu0 %v2673
    %2993 = vmatpush1.bf16.msra.mxu0 %v2672
    %2994 = vmatprep.subr.bf16.mxu0 %v2677
    %2995 = vmatpush1.bf16.msra.mxu0 %v2676
    %2996 = vmatprep.subr.bf16.mxu0 %v2681
    %2997 = vmatpush1.bf16.msra.mxu0 %v2680
    %2998 = vmatprep.subr.bf16.mxu0 %v2685
    %2999 = vmatpush1.bf16.msra.mxu0 %v2684
    %3000 = vmatprep.subr.bf16.mxu0 %v2689
    %3001 = vmatpush1.bf16.msra.mxu0 %v2688
    %3002 = vmatprep.subr.bf16.mxu0 %v2693
    %3003 = vmatpush1.bf16.msra.mxu0 %v2692
    %3004 = vmatprep.subr.bf16.mxu0 %v2697
    %3005 = vmatpush1.bf16.msra.mxu0 %v2696
    %3006 = vmatprep.subr.bf16.mxu0 %v2701
    %3007 = vmatpush1.bf16.msra.mxu0 %v2700
    %3008 = vmatprep.mubr.bf16.mxu0 %v2086
    %3009 = vmatmul.mubr.bf16.gmra.mrb[0].mxu0 %v2085
    %v3010 = vpop.f32.mrb[0].mxu0
    %v3011 = vadd.f32 %v2249, %v3010
    %v3012 = vpop.f32.mrb[0].mxu0
    %v3013 = vadd.f32 %v2253, %v3012
    %v3014 = vpop.f32.mrb[0].mxu0
    %v3015 = vpop.f32.mrb[0].mxu0
    %3016 = vdwg.mxu0
    %3017 = vmatprep.subr.bf16.mxu0 %v2705
    %3018 = vmatpush1.bf16.msra.mxu0 %v2704
    %3019 = vmatprep.subr.bf16.mxu0 %v2709
    %3020 = vmatpush1.bf16.msra.mxu0 %v2708
    %3021 = vmatprep.subr.bf16.mxu0 %v2713
    %3022 = vmatpush1.bf16.msra.mxu0 %v2712
    %3023 = vmatprep.subr.bf16.mxu0 %v2717
    %3024 = vmatpush1.bf16.msra.mxu0 %v2716
    %3025 = vmatprep.subr.bf16.mxu0 %v2721
    %3026 = vmatpush1.bf16.msra.mxu0 %v2720
    %3027 = vmatprep.subr.bf16.mxu0 %v2725
    %3028 = vmatpush1.bf16.msra.mxu0 %v2724
    %3029 = vmatprep.subr.bf16.mxu0 %v2729
    %3030 = vmatpush1.bf16.msra.mxu0 %v2728
    %3031 = vmatprep.subr.bf16.mxu0 %v2733
    %3032 = vmatpush1.bf16.msra.mxu0 %v2732
    %3033 = vmatprep.subr.bf16.mxu0 %v2737
    %3034 = vmatpush1.bf16.msra.mxu0 %v2736
    %3035 = vmatprep.subr.bf16.mxu0 %v2741
    %3036 = vmatpush1.bf16.msra.mxu0 %v2740
    %3037 = vmatprep.subr.bf16.mxu0 %v2745
    %3038 = vmatpush1.bf16.msra.mxu0 %v2744
    %3039 = vmatprep.subr.bf16.mxu0 %v2749
    %3040 = vmatpush1.bf16.msra.mxu0 %v2748
    %3041 = vmatprep.subr.bf16.mxu0 %v2753
    %3042 = vmatpush1.bf16.msra.mxu0 %v2752
    %3043 = vmatprep.subr.bf16.mxu0 %v2757
    %3044 = vmatpush1.bf16.msra.mxu0 %v2756
    %3045 = vmatprep.subr.bf16.mxu0 %v2761
    %3046 = vmatpush1.bf16.msra.mxu0 %v2760
    %3047 = vmatprep.subr.bf16.mxu0 %v2765
    %3048 = vmatpush1.bf16.msra.mxu0 %v2764
    %3049 = vmatprep.mubr.bf16.mxu0 %v2088
    %3050 = vmatmul.mubr.bf16.gmra.mrb[0].mxu0 %v2087
    %v3051 = vpop.f32.mrb[0].mxu0
    %v3052 = vadd.f32 %v3011, %v3051
    %v3053 = vpop.f32.mrb[0].mxu0
    %v3054 = vadd.f32 %v3013, %v3053
    %v3055 = vpop.f32.mrb[0].mxu0
    %v3056 = vpop.f32.mrb[0].mxu0
    %3057 = vdwg.mxu0
    %vm3058 = vcmp.ge.f32.partialorder %v2970, 0.0
    %vm3059 = vcmp.ge.f32.partialorder %v2972, 0.0
    %vm3060 = vcmp.ge.f32.partialorder %v3052, 0.0
    %vm3061 = vcmp.ge.f32.partialorder %v3054, 0.0
    %v3062 = vmul.f32 %v2970, 0.2
    %v3063 = vmul.f32 %v2972, 0.2
    %v3064 = vmul.f32 %v3052, 0.2
    %v3065 = vmul.f32 %v3054, 0.2
    %v3066 = vsel %vm3058, %v2970, %v3062
    %v3067 = vsel %vm3059, %v2972, %v3063
    %v3068 = vsel %vm3060, %v3052, %v3064
    %v3069 = vsel %vm3061, %v3054, %v3065
    %v3070 = vmul.f32 %v3066, 1.4142135
    %v3071 = vmul.f32 %v3067, 1.4142135
    %v3072 = vmul.f32 %v3068, 1.4142135
    %v3073 = vmul.f32 %v3069, 1.4142135
    %v3074 = vpack.c.bf16 %v3070, %v3070
    %v3075 = vpack.c.bf16 %v3071, %v3071
    %v3076 = vpack.c.bf16 %v3072, %v3072
    %v3077 = vpack.c.bf16 %v3073, %v3073
    %v3078 = vld [vmem:[#allocation8] sm:$0xff]
    %v3079 = vld [vmem:[#allocation8 + $0x8] sm:$0xff]
    %v3080 = vld [vmem:[#allocation8 + $0x10] sm:$0xff]
    %v3081 = vld [vmem:[#allocation8 + $0x18] sm:$0xff]
    %v3082 = vld [vmem:[#allocation8 + $0x20] sm:$0xff]
    %v3083 = vld [vmem:[#allocation8 + $0x28] sm:$0xff]
    %v3084 = vld [vmem:[#allocation8 + $0x30] sm:$0xff]
    %v3085 = vld [vmem:[#allocation8 + $0x38] sm:$0xff]
    %v3086 = vld [vmem:[#allocation8 + $0x40] sm:$0xff]
    %v3087 = vld [vmem:[#allocation8 + $0x48] sm:$0xff]
    %v3088 = vld [vmem:[#allocation8 + $0x50] sm:$0xff]
    %v3089 = vld [vmem:[#allocation8 + $0x58] sm:$0xff]
    %v3090 = vld [vmem:[#allocation8 + $0x60] sm:$0xff]
    %v3091 = vld [vmem:[#allocation8 + $0x68] sm:$0xff]
    %v3092 = vld [vmem:[#allocation8 + $0x70] sm:$0xff]
    %v3093 = vld [vmem:[#allocation8 + $0x78] sm:$0xff]
    %v3094 = vld [vmem:[#allocation8 + $0x80] sm:$0xff]
    %v3095 = vld [vmem:[#allocation8 + $0x88] sm:$0xff]
    %v3096 = vld [vmem:[#allocation8 + $0x90] sm:$0xff]
    %v3097 = vld [vmem:[#allocation8 + $0x98] sm:$0xff]
    %v3098 = vld [vmem:[#allocation8 + $0xa0] sm:$0xff]
    %v3099 = vld [vmem:[#allocation8 + $0xa8] sm:$0xff]
    %v3100 = vld [vmem:[#allocation8 + $0xb0] sm:$0xff]
    %v3101 = vld [vmem:[#allocation8 + $0xb8] sm:$0xff]
    %v3102 = vld [vmem:[#allocation8 + $0xc0] sm:$0xff]
    %v3103 = vld [vmem:[#allocation8 + $0xc8] sm:$0xff]
    %v3104 = vld [vmem:[#allocation8 + $0xd0] sm:$0xff]
    %v3105 = vld [vmem:[#allocation8 + $0xd8] sm:$0xff]
    %v3106 = vld [vmem:[#allocation8 + $0xe0] sm:$0xff]
    %v3107 = vld [vmem:[#allocation8 + $0xe8] sm:$0xff]
    %v3108 = vld [vmem:[#allocation8 + $0xf0] sm:$0xff]
    %v3109 = vld [vmem:[#allocation8 + $0xf8] sm:$0xff]
    %v3110 = vld [vmem:[#allocation8 + $0x100] sm:$0xff]
    %v3111 = vld [vmem:[#allocation8 + $0x108] sm:$0xff]
    %v3112 = vld [vmem:[#allocation8 + $0x110] sm:$0xff]
    %v3113 = vld [vmem:[#allocation8 + $0x118] sm:$0xff]
    %v3114 = vld [vmem:[#allocation8 + $0x120] sm:$0xff]
    %v3115 = vld [vmem:[#allocation8 + $0x128] sm:$0xff]
    %v3116 = vld [vmem:[#allocation8 + $0x130] sm:$0xff]
    %v3117 = vld [vmem:[#allocation8 + $0x138] sm:$0xff]
    %v3118 = vld [vmem:[#allocation8 + $0x140] sm:$0xff]
    %v3119 = vld [vmem:[#allocation8 + $0x148] sm:$0xff]
    %v3120 = vld [vmem:[#allocation8 + $0x150] sm:$0xff]
    %v3121 = vld [vmem:[#allocation8 + $0x158] sm:$0xff]
    %v3122 = vld [vmem:[#allocation8 + $0x160] sm:$0xff]
    %v3123 = vld [vmem:[#allocation8 + $0x168] sm:$0xff]
    %v3124 = vld [vmem:[#allocation8 + $0x170] sm:$0xff]
    %v3125 = vld [vmem:[#allocation8 + $0x178] sm:$0xff]
    %v3126 = vld [vmem:[#allocation8 + $0x180] sm:$0xff]
    %v3127 = vld [vmem:[#allocation8 + $0x188] sm:$0xff]
    %v3128 = vld [vmem:[#allocation8 + $0x190] sm:$0xff]
    %v3129 = vld [vmem:[#allocation8 + $0x198] sm:$0xff]
    %v3130 = vld [vmem:[#allocation8 + $0x1a0] sm:$0xff]
    %v3131 = vld [vmem:[#allocation8 + $0x1a8] sm:$0xff]
    %v3132 = vld [vmem:[#allocation8 + $0x1b0] sm:$0xff]
    %v3133 = vld [vmem:[#allocation8 + $0x1b8] sm:$0xff]
    %v3134 = vld [vmem:[#allocation8 + $0x1c0] sm:$0xff]
    %v3135 = vld [vmem:[#allocation8 + $0x1c8] sm:$0xff]
    %v3136 = vld [vmem:[#allocation8 + $0x1d0] sm:$0xff]
    %v3137 = vld [vmem:[#allocation8 + $0x1d8] sm:$0xff]
    %v3138 = vld [vmem:[#allocation8 + $0x1e0] sm:$0xff]
    %v3139 = vld [vmem:[#allocation8 + $0x1e8] sm:$0xff]
    %v3140 = vld [vmem:[#allocation8 + $0x1f0] sm:$0xff]
    %v3141 = vld [vmem:[#allocation8 + $0x1f8] sm:$0xff]
    %v3142 = vld [vmem:[#allocation10] sm:$0x3]
    %v3144 = vlaneseq
    %v3145 = vshrl.u32 %v3144, 7
    %v3146 = vsub.s32 0, %v3145
    %v3147 = vrot.slane %v3142, %v3146
    %v3148 = vlaneseq
    %v3149 = vshrl.u32 %v3148, 7
    %v3150 = vsub.s32 1, %v3149
    %v3151 = vrot.slane %v3142, %v3150
    %v3218 = vunpack.c.l.b16 %v3078
    %v3219 = vunpack.c.h.b16 %v3078
    %v3220 = vunpack.c.l.b16 %v3079
    %v3221 = vunpack.c.h.b16 %v3079
    %v3222 = vunpack.c.l.b16 %v3080
    %v3223 = vunpack.c.h.b16 %v3080
    %v3224 = vunpack.c.l.b16 %v3081
    %v3225 = vunpack.c.h.b16 %v3081
    %v3226 = vunpack.c.l.b16 %v3082
    %v3227 = vunpack.c.h.b16 %v3082
    %v3228 = vunpack.c.l.b16 %v3083
    %v3229 = vunpack.c.h.b16 %v3083
    %v3230 = vunpack.c.l.b16 %v3084
    %v3231 = vunpack.c.h.b16 %v3084
    %v3232 = vunpack.c.l.b16 %v3085
    %v3233 = vunpack.c.h.b16 %v3085
    %v3234 = vunpack.c.l.b16 %v3086
    %v3235 = vunpack.c.h.b16 %v3086
    %v3236 = vunpack.c.l.b16 %v3087
    %v3237 = vunpack.c.h.b16 %v3087
    %v3238 = vunpack.c.l.b16 %v3088
    %v3239 = vunpack.c.h.b16 %v3088
    %v3240 = vunpack.c.l.b16 %v3089
    %v3241 = vunpack.c.h.b16 %v3089
    %v3242 = vunpack.c.l.b16 %v3090
    %v3243 = vunpack.c.h.b16 %v3090
    %v3244 = vunpack.c.l.b16 %v3091
    %v3245 = vunpack.c.h.b16 %v3091
    %v3246 = vunpack.c.l.b16 %v3092
    %v3247 = vunpack.c.h.b16 %v3092
    %v3248 = vunpack.c.l.b16 %v3093
    %v3249 = vunpack.c.h.b16 %v3093
    %v3250 = vunpack.c.l.b16 %v3094
    %v3251 = vunpack.c.h.b16 %v3094
    %v3252 = vunpack.c.l.b16 %v3095
    %v3253 = vunpack.c.h.b16 %v3095
    %v3254 = vunpack.c.l.b16 %v3096
    %v3255 = vunpack.c.h.b16 %v3096
    %v3256 = vunpack.c.l.b16 %v3097
    %v3257 = vunpack.c.h.b16 %v3097
    %v3258 = vunpack.c.l.b16 %v3098
    %v3259 = vunpack.c.h.b16 %v3098
    %v3260 = vunpack.c.l.b16 %v3099
    %v3261 = vunpack.c.h.b16 %v3099
    %v3262 = vunpack.c.l.b16 %v3100
    %v3263 = vunpack.c.h.b16 %v3100
    %v3264 = vunpack.c.l.b16 %v3101
    %v3265 = vunpack.c.h.b16 %v3101
    %v3266 = vunpack.c.l.b16 %v3102
    %v3267 = vunpack.c.h.b16 %v3102
    %v3268 = vunpack.c.l.b16 %v3103
    %v3269 = vunpack.c.h.b16 %v3103
    %v3270 = vunpack.c.l.b16 %v3104
    %v3271 = vunpack.c.h.b16 %v3104
    %v3272 = vunpack.c.l.b16 %v3105
    %v3273 = vunpack.c.h.b16 %v3105
    %v3274 = vunpack.c.l.b16 %v3106
    %v3275 = vunpack.c.h.b16 %v3106
    %v3276 = vunpack.c.l.b16 %v3107
    %v3277 = vunpack.c.h.b16 %v3107
    %v3278 = vunpack.c.l.b16 %v3108
    %v3279 = vunpack.c.h.b16 %v3108
    %v3280 = vunpack.c.l.b16 %v3109
    %v3281 = vunpack.c.h.b16 %v3109
    %v3282 = vunpack.c.l.b16 %v3110
    %v3283 = vunpack.c.h.b16 %v3110
    %v3284 = vunpack.c.l.b16 %v3111
    %v3285 = vunpack.c.h.b16 %v3111
    %v3286 = vunpack.c.l.b16 %v3112
    %v3287 = vunpack.c.h.b16 %v3112
    %v3288 = vunpack.c.l.b16 %v3113
    %v3289 = vunpack.c.h.b16 %v3113
    %v3290 = vunpack.c.l.b16 %v3114
    %v3291 = vunpack.c.h.b16 %v3114
    %v3292 = vunpack.c.l.b16 %v3115
    %v3293 = vunpack.c.h.b16 %v3115
    %v3294 = vunpack.c.l.b16 %v3116
    %v3295 = vunpack.c.h.b16 %v3116
    %v3296 = vunpack.c.l.b16 %v3117
    %v3297 = vunpack.c.h.b16 %v3117
    %v3298 = vunpack.c.l.b16 %v3118
    %v3299 = vunpack.c.h.b16 %v3118
    %v3300 = vunpack.c.l.b16 %v3119
    %v3301 = vunpack.c.h.b16 %v3119
    %v3302 = vunpack.c.l.b16 %v3120
    %v3303 = vunpack.c.h.b16 %v3120
    %v3304 = vunpack.c.l.b16 %v3121
    %v3305 = vunpack.c.h.b16 %v3121
    %v3306 = vunpack.c.l.b16 %v3122
    %v3307 = vunpack.c.h.b16 %v3122
    %v3308 = vunpack.c.l.b16 %v3123
    %v3309 = vunpack.c.h.b16 %v3123
    %v3310 = vunpack.c.l.b16 %v3124
    %v3311 = vunpack.c.h.b16 %v3124
    %v3312 = vunpack.c.l.b16 %v3125
    %v3313 = vunpack.c.h.b16 %v3125
    %v3314 = vunpack.c.l.b16 %v3126
    %v3315 = vunpack.c.h.b16 %v3126
    %v3316 = vunpack.c.l.b16 %v3127
    %v3317 = vunpack.c.h.b16 %v3127
    %v3318 = vunpack.c.l.b16 %v3128
    %v3319 = vunpack.c.h.b16 %v3128
    %v3320 = vunpack.c.l.b16 %v3129
    %v3321 = vunpack.c.h.b16 %v3129
    %v3322 = vunpack.c.l.b16 %v3130
    %v3323 = vunpack.c.h.b16 %v3130
    %v3324 = vunpack.c.l.b16 %v3131
    %v3325 = vunpack.c.h.b16 %v3131
    %v3326 = vunpack.c.l.b16 %v3132
    %v3327 = vunpack.c.h.b16 %v3132
    %v3328 = vunpack.c.l.b16 %v3133
    %v3329 = vunpack.c.h.b16 %v3133
    %v3330 = vunpack.c.l.b16 %v3134
    %v3331 = vunpack.c.h.b16 %v3134
    %v3332 = vunpack.c.l.b16 %v3135
    %v3333 = vunpack.c.h.b16 %v3135
    %v3334 = vunpack.c.l.b16 %v3136
    %v3335 = vunpack.c.h.b16 %v3136
    %v3336 = vunpack.c.l.b16 %v3137
    %v3337 = vunpack.c.h.b16 %v3137
    %v3338 = vunpack.c.l.b16 %v3138
    %v3339 = vunpack.c.h.b16 %v3138
    %v3340 = vunpack.c.l.b16 %v3139
    %v3341 = vunpack.c.h.b16 %v3139
    %v3342 = vunpack.c.l.b16 %v3140
    %v3343 = vunpack.c.h.b16 %v3140
    %v3344 = vunpack.c.l.b16 %v3141
    %v3345 = vunpack.c.h.b16 %v3141
    %v3346 = vpack.c.b16 %v3220, %v3218
    %v3347 = vpack.c.b16 %v3221, %v3219
    %v3348 = vpack.c.b16 %v3224, %v3222
    %v3349 = vpack.c.b16 %v3225, %v3223
    %v3350 = vpack.c.b16 %v3228, %v3226
    %v3351 = vpack.c.b16 %v3229, %v3227
    %v3352 = vpack.c.b16 %v3232, %v3230
    %v3353 = vpack.c.b16 %v3233, %v3231
    %v3354 = vpack.c.b16 %v3236, %v3234
    %v3355 = vpack.c.b16 %v3237, %v3235
    %v3356 = vpack.c.b16 %v3240, %v3238
    %v3357 = vpack.c.b16 %v3241, %v3239
    %v3358 = vpack.c.b16 %v3244, %v3242
    %v3359 = vpack.c.b16 %v3245, %v3243
    %v3360 = vpack.c.b16 %v3248, %v3246
    %v3361 = vpack.c.b16 %v3249, %v3247
    %v3362 = vpack.c.b16 %v3252, %v3250
    %v3363 = vpack.c.b16 %v3253, %v3251
    %v3364 = vpack.c.b16 %v3256, %v3254
    %v3365 = vpack.c.b16 %v3257, %v3255
    %v3366 = vpack.c.b16 %v3260, %v3258
    %v3367 = vpack.c.b16 %v3261, %v3259
    %v3368 = vpack.c.b16 %v3264, %v3262
    %v3369 = vpack.c.b16 %v3265, %v3263
    %v3370 = vpack.c.b16 %v3268, %v3266
    %v3371 = vpack.c.b16 %v3269, %v3267
    %v3372 = vpack.c.b16 %v3272, %v3270
    %v3373 = vpack.c.b16 %v3273, %v3271
    %v3374 = vpack.c.b16 %v3276, %v3274
    %v3375 = vpack.c.b16 %v3277, %v3275
    %v3376 = vpack.c.b16 %v3280, %v3278
    %v3377 = vpack.c.b16 %v3281, %v3279
    %v3378 = vpack.c.b16 %v3284, %v3282
    %v3379 = vpack.c.b16 %v3285, %v3283
    %v3380 = vpack.c.b16 %v3288, %v3286
    %v3381 = vpack.c.b16 %v3289, %v3287
    %v3382 = vpack.c.b16 %v3292, %v3290
    %v3383 = vpack.c.b16 %v3293, %v3291
    %v3384 = vpack.c.b16 %v3296, %v3294
    %v3385 = vpack.c.b16 %v3297, %v3295
    %v3386 = vpack.c.b16 %v3300, %v3298
    %v3387 = vpack.c.b16 %v3301, %v3299
    %v3388 = vpack.c.b16 %v3304, %v3302
    %v3389 = vpack.c.b16 %v3305, %v3303
    %v3390 = vpack.c.b16 %v3308, %v3306
    %v3391 = vpack.c.b16 %v3309, %v3307
    %v3392 = vpack.c.b16 %v3312, %v3310
    %v3393 = vpack.c.b16 %v3313, %v3311
    %v3394 = vpack.c.b16 %v3316, %v3314
    %v3395 = vpack.c.b16 %v3317, %v3315
    %v3396 = vpack.c.b16 %v3320, %v3318
    %v3397 = vpack.c.b16 %v3321, %v3319
    %v3398 = vpack.c.b16 %v3324, %v3322
    %v3399 = vpack.c.b16 %v3325, %v3323
    %v3400 = vpack.c.b16 %v3328, %v3326
    %v3401 = vpack.c.b16 %v3329, %v3327
    %v3402 = vpack.c.b16 %v3332, %v3330
    %v3403 = vpack.c.b16 %v3333, %v3331
    %v3404 = vpack.c.b16 %v3336, %v3334
    %v3405 = vpack.c.b16 %v3337, %v3335
    %v3406 = vpack.c.b16 %v3340, %v3338
    %v3407 = vpack.c.b16 %v3341, %v3339
    %v3408 = vpack.c.b16 %v3344, %v3342
    %v3409 = vpack.c.b16 %v3345, %v3343
    %3474 = vmatprep.subr.bf16.mxu0 %v3347
    %3475 = vmatpush1.bf16.msra.mxu0 %v3346
    %3476 = vmatprep.subr.bf16.mxu0 %v3349
    %3477 = vmatpush1.bf16.msra.mxu0 %v3348
    %3478 = vmatprep.subr.bf16.mxu0 %v3351
    %3479 = vmatpush1.bf16.msra.mxu0 %v3350
    %3480 = vmatprep.subr.bf16.mxu0 %v3353
    %3481 = vmatpush1.bf16.msra.mxu0 %v3352
    %3482 = vmatprep.subr.bf16.mxu0 %v3355
    %3483 = vmatpush1.bf16.msra.mxu0 %v3354
    %3484 = vmatprep.subr.bf16.mxu0 %v3357
    %3485 = vmatpush1.bf16.msra.mxu0 %v3356
    %3486 = vmatprep.subr.bf16.mxu0 %v3359
    %3487 = vmatpush1.bf16.msra.mxu0 %v3358
    %3488 = vmatprep.subr.bf16.mxu0 %v3361
    %3489 = vmatpush1.bf16.msra.mxu0 %v3360
    %3490 = vmatprep.subr.bf16.mxu0 %v3363
    %3491 = vmatpush1.bf16.msra.mxu0 %v3362
    %3492 = vmatprep.subr.bf16.mxu0 %v3365
    %3493 = vmatpush1.bf16.msra.mxu0 %v3364
    %3494 = vmatprep.subr.bf16.mxu0 %v3367
    %3495 = vmatpush1.bf16.msra.mxu0 %v3366
    %3496 = vmatprep.subr.bf16.mxu0 %v3369
    %3497 = vmatpush1.bf16.msra.mxu0 %v3368
    %3498 = vmatprep.subr.bf16.mxu0 %v3371
    %3499 = vmatpush1.bf16.msra.mxu0 %v3370
    %3500 = vmatprep.subr.bf16.mxu0 %v3373
    %3501 = vmatpush1.bf16.msra.mxu0 %v3372
    %3502 = vmatprep.subr.bf16.mxu0 %v3375
    %3503 = vmatpush1.bf16.msra.mxu0 %v3374
    %3504 = vmatprep.subr.bf16.mxu0 %v3377
    %3505 = vmatpush1.bf16.msra.mxu0 %v3376
    %3506 = vmatprep.mubr.bf16.mxu0 %v3075
    %3507 = vmatmul.mubr.bf16.gmra.mrb[0].mxu0 %v3074
    %v3508 = vpop.f32.mrb[0].mxu0
    %v3509 = vadd.f32 %v3147, %v3508
    %v3510 = vpop.f32.mrb[0].mxu0
    %v3511 = vadd.f32 %v3151, %v3510
    %v3512 = vpop.f32.mrb[0].mxu0
    %v3513 = vpop.f32.mrb[0].mxu0
    %3514 = vdwg.mxu0
    %3515 = vmatprep.subr.bf16.mxu0 %v3379
    %3516 = vmatpush1.bf16.msra.mxu0 %v3378
    %3517 = vmatprep.subr.bf16.mxu0 %v3381
    %3518 = vmatpush1.bf16.msra.mxu0 %v3380
    %3519 = vmatprep.subr.bf16.mxu0 %v3383
    %3520 = vmatpush1.bf16.msra.mxu0 %v3382
    %3521 = vmatprep.subr.bf16.mxu0 %v3385
    %3522 = vmatpush1.bf16.msra.mxu0 %v3384
    %3523 = vmatprep.subr.bf16.mxu0 %v3387
    %3524 = vmatpush1.bf16.msra.mxu0 %v3386
    %3525 = vmatprep.subr.bf16.mxu0 %v3389
    %3526 = vmatpush1.bf16.msra.mxu0 %v3388
    %3527 = vmatprep.subr.bf16.mxu0 %v3391
    %3528 = vmatpush1.bf16.msra.mxu0 %v3390
    %3529 = vmatprep.subr.bf16.mxu0 %v3393
    %3530 = vmatpush1.bf16.msra.mxu0 %v3392
    %3531 = vmatprep.subr.bf16.mxu0 %v3395
    %3532 = vmatpush1.bf16.msra.mxu0 %v3394
    %3533 = vmatprep.subr.bf16.mxu0 %v3397
    %3534 = vmatpush1.bf16.msra.mxu0 %v3396
    %3535 = vmatprep.subr.bf16.mxu0 %v3399
    %3536 = vmatpush1.bf16.msra.mxu0 %v3398
    %3537 = vmatprep.subr.bf16.mxu0 %v3401
    %3538 = vmatpush1.bf16.msra.mxu0 %v3400
    %3539 = vmatprep.subr.bf16.mxu0 %v3403
    %3540 = vmatpush1.bf16.msra.mxu0 %v3402
    %3541 = vmatprep.subr.bf16.mxu0 %v3405
    %3542 = vmatpush1.bf16.msra.mxu0 %v3404
    %3543 = vmatprep.subr.bf16.mxu0 %v3407
    %3544 = vmatpush1.bf16.msra.mxu0 %v3406
    %3545 = vmatprep.subr.bf16.mxu0 %v3409
    %3546 = vmatpush1.bf16.msra.mxu0 %v3408
    %3547 = vmatprep.mubr.bf16.mxu0 %v3077
    %3548 = vmatmul.mubr.bf16.gmra.mrb[0].mxu0 %v3076
    %v3549 = vpop.f32.mrb[0].mxu0
    %v3550 = vadd.f32 %v3509, %v3549
    %v3551 = vpop.f32.mrb[0].mxu0
    %v3552 = vadd.f32 %v3511, %v3551
    %v3553 = vpop.f32.mrb[0].mxu0
    %v3554 = vpop.f32.mrb[0].mxu0
    %3555 = vdwg.mxu0
    %vm3556 = vcmp.ge.f32.partialorder %v3550, 0.0
    %vm3557 = vcmp.ge.f32.partialorder %v3552, 0.0
    %v3558 = vmul.f32 %v3550, 0.2
    %v3559 = vmul.f32 %v3552, 0.2
    %v3560 = vsel %vm3556, %v3550, %v3558
    %v3561 = vsel %vm3557, %v3552, %v3559
    %v3562 = vmul.f32 %v3560, 1.4142135
    %v3563 = vmul.f32 %v3561, 1.4142135
    %3564 = vst [vmem:[#allocation11] sm:$0xff] %v3562
    %3565 = vst [vmem:[#allocation11 + $0x8] sm:$0xff] %v3563
    // Predicated region
    $region42: #{tpu_custom_call.1} parent=1 // pred_check
      _
    $region43: #{tpu_custom_call.1} parent=1 // pred_check_branch
      %3567 = sbr.rel (0) target = $region45
    $region44: #{tpu_custom_call.1} parent=1 // pred_region
      %s3569 = ssub.s32 256, 256
      %3570 = vsyncadd [#allocation4], %s3569
      %s3572 = sshll.u32 [#allocation11], 4
      %s3573 = int_to_ptr.vmem [resolvable:$true] %s3572
      %3575 = dma.vmem_to_hbm [thread:$0]  %s3573, 256, %s5, [#allocation4]
    $region45: #{tpu_custom_call.1} parent=1 // pred_fallthru
      _
    // Predicated region
    $region46: #{tpu_custom_call.1} parent=1 // pred_check
      _
    $region47: #{tpu_custom_call.1} parent=1 // pred_check_branch
      %3577 = sbr.rel (0) target = $region49
    $region48: #{tpu_custom_call.1} parent=1 // pred_region
      %3578 = dma.done [#allocation4], 256
    $region49: #{tpu_custom_call.1} parent=1 // pred_fallthru
      _
    %3579 = vsyncpa [#allocation3], 1
    %3580 = vsyncpa [#allocation6], 1
    %3581 = vsyncpa [#allocation9], 1
    %3582 = vsyncpa [#allocation4], 1

</llo_original>
